<compile_context>
chip_gen: v6e
topology: v6e:2x2x1
jax: 0.10.0
libtpu: 0.0.40
codegen_flags: <defaults>
</compile_context>

<pallas_src>
import functools
import math

import jax
import jax.numpy as jnp
import numpy as np
from jax.experimental import pallas as pl
from jax.experimental.pallas import tpu as pltpu


def _round_up(a, b):
    return ((a + b - 1) // b) * b


def _cdiv(a, b):
    return -(-a // b)


# ---------------------------------------------------------------------------
# Fused kernel: one (batch, L-tile) step computes
#   ConvT(32->32,k4,s2,p1)+BN+ReLU -> ConvT(32->32,k4,s2,p1)+BN+ReLU ->
#   ConvT(32->1,k16,s8,p4)+Tanh
# entirely in VMEM.  Row i of the output block holds the 32 consecutive
# waveform samples produced by input row (tile_start + i).
# ---------------------------------------------------------------------------
def _synth_fused_kernel(x_ref, halo_ref, w1_ref, w2_ref, w3_ref,
                        b1_ref, b2_ref, b3_ref, o_ref,
                        xw, abuf, bbuf, *, tl):
    f32 = jnp.float32
    t = pl.program_id(1)
    nt = pl.num_programs(1)
    h = x_ref.shape[2]
    m = tl + 2                      # rows computed for the intermediate stages

    # -- stage 0: input window with +/-2-row halo: xw[u] = x[t*tl - 2 + u] ----
    xw[pl.ds(0, 2), :] = halo_ref[0, 0, 0:2, :]
    xw[pl.ds(2, tl), :] = x_ref[0]
    xw[pl.ds(tl + 2, 2), :] = halo_ref[0, 0, 2:4, :]

    # -- stage 1: layer 1; abuf[1 + i] packs (y1[2g], y1[2g+1]), g = t*tl-1+i -
    y1 = jnp.dot(xw[pl.ds(2, m), :], w1_ref[0], preferred_element_type=f32)
    y1 = y1 + jnp.dot(xw[pl.ds(1, m), :], w1_ref[1], preferred_element_type=f32)
    y1 = y1 + jnp.dot(xw[pl.ds(0, m), :], w1_ref[2], preferred_element_type=f32)
    y1 = jnp.maximum(y1 + b1_ref[0], 0.0)
    abuf[pl.ds(0, 1), :] = jnp.zeros((1, 2 * h), f32)      # halo rows only feed
    abuf[pl.ds(1, m), :] = y1                               # zero-weight blocks
    abuf[pl.ds(m + 1, 1), :] = jnp.zeros((1, 2 * h), f32)

    @pl.when(t == 0)
    def _():   # y1 rows before the start of the sequence do not exist
        abuf[pl.ds(1, 1), :] = jnp.zeros((1, 2 * h), f32)

    @pl.when(t == nt - 1)
    def _():   # y1 rows past the end of the sequence do not exist
        abuf[pl.ds(m, 1), :] = jnp.zeros((1, 2 * h), f32)

    # -- stage 2: layer 2; bbuf[i] packs (y2[4g], .., y2[4g+3]), g = t*tl-1+i -
    y2 = jnp.dot(abuf[pl.ds(0, m), :], w2_ref[0], preferred_element_type=f32)
    y2 = y2 + jnp.dot(abuf[pl.ds(1, m), :], w2_ref[1], preferred_element_type=f32)
    y2 = y2 + jnp.dot(abuf[pl.ds(2, m), :], w2_ref[2], preferred_element_type=f32)
    y2 = jnp.maximum(y2 + b2_ref[0], 0.0)
    bbuf[pl.ds(0, m), :] = y2

    @pl.when(t == 0)
    def _():   # y2 rows before the start of the sequence do not exist
        bbuf[pl.ds(0, 1), :] = jnp.zeros((1, 4 * h), f32)

    @pl.when(t == nt - 1)
    def _():   # y2 rows past the end of the sequence do not exist
        bbuf[pl.ds(m - 1, 1), :] = jnp.zeros((1, 4 * h), f32)

    # -- stage 3: layer 3 + tanh; output row i = waveform samples [32i, 32i+32)
    wav = jnp.dot(bbuf[pl.ds(0, tl), :], w3_ref[0], preferred_element_type=f32)
    wav = wav + jnp.dot(bbuf[pl.ds(1, tl), :], w3_ref[1], preferred_element_type=f32)
    wav = wav + jnp.dot(bbuf[pl.ds(2, tl), :], w3_ref[2], preferred_element_type=f32)
    o_ref[0] = jnp.tanh(wav + b3_ref[0]).astype(o_ref.dtype)


# ---------------------------------------------------------------------------
# Parameter packing (done ONCE, host-side numpy) - builds the block-structured
# shifted-dot weights with BN scale folded in and per-position packed biases.
# ---------------------------------------------------------------------------
def pack_params(params):
    assert len(params) == 3, "fused path implemented for n_layers == 3"
    p1, p2, p3 = params
    assert (p1["stride"], p1["kernel"], p1["pad"]) == (2, 4, 1)
    assert (p2["stride"], p2["kernel"], p2["pad"]) == (2, 4, 1)
    assert (p3["stride"], p3["kernel"], p3["pad"]) == (8, 16, 4)
    assert p3["w_ciok"].shape[1] == 1, "fused path assumes out_channels == 1"
    H = p1["w_ciok"].shape[0]

    def fold(p):
        w = np.asarray(p["w_ciok"], np.float32)
        w = w * np.asarray(p["scale"], np.float32)[None, :, None]
        return w, np.asarray(p["bias"], np.float32)

    w1, b1 = fold(p1)
    w2, b2 = fold(p2)
    w3, b3 = fold(p3)

    def tap2(w, dl, r):                 # stride-2 / k4 / p1 tap, or zeros
        j = 2 * dl + r + 1
        if 0 <= j < 4:
            return w[:, :, j]
        return np.zeros((w.shape[0], w.shape[1]), np.float32)

    # layer 1: stacked [dl=-1, dl=0, dl=+1], each [H, 2H] (phase r in cols r*H:)
    W1 = np.zeros((3, H, 2 * H), np.float32)
    for k, dl in enumerate((-1, 0, 1)):
        for r in range(2):
            W1[k, :, r * H:(r + 1) * H] = tap2(w1, dl, r)
    B1 = np.tile(b1, 2)[None]                                   # [1, 2H]

    # layer 2: stacked [left, center, right], each [2H, 4H]
    W2 = np.zeros((3, 2 * H, 4 * H), np.float32)

    def put2(which, ib, ob, mat):
        W2[which, ib * H:(ib + 1) * H, ob * H:(ob + 1) * H] = mat

    put2(1, 0, 0, tap2(w2, 0, 0))   # center operand  (y1 pair at same row)
    put2(1, 0, 1, tap2(w2, 0, 1))
    put2(1, 0, 2, tap2(w2, 1, 0))
    put2(1, 1, 1, tap2(w2, -1, 1))
    put2(1, 1, 2, tap2(w2, 0, 0))
    put2(1, 1, 3, tap2(w2, 0, 1))
    put2(0, 1, 0, tap2(w2, 1, 0))   # left operand   (y1 pair at previous row)
    put2(2, 0, 3, tap2(w2, -1, 1))  # right operand  (y1 pair at next row)
    B2 = np.tile(b2, 4)[None]                                   # [1, 4H]

    # layer 3: stacked [left, center, right], each [4H, 32]
    def tap3(dl):                       # [H, 8] stride-8 / k16 / p4 taps
        out = np.zeros((H, 8), np.float32)
        for r in range(8):
            j = 8 * dl + r + 4
            if 0 <= j < 16:
                out[:, r] = w3[:, 0, j]
        return out

    h3 = {dl: tap3(dl) for dl in (-1, 0, 1)}
    W3 = np.zeros((3, 4 * H, 32), np.float32)
    for i in range(4):                  # center operand: in-block i -> out-block tt
        for tt in range(4):
            if abs(tt - i) <= 1:
                W3[1, i * H:(i + 1) * H, tt * 8:(tt + 1) * 8] = h3[tt - i]
    W3[0, 3 * H:4 * H, 0:8] = h3[1]     # left operand:  its last y2 slot -> first 8 samples
    W3[2, 0:H, 24:32] = h3[-1]          # right operand: its first y2 slot -> last 8 samples
    B3 = np.full((1, 32), float(b3[0]), np.float32)

    return tuple(jnp.asarray(a) for a in (W1, W2, W3, B1, B2, B3))


# ---------------------------------------------------------------------------
# Wrapper
# ---------------------------------------------------------------------------
def audio_synthesizer_forward(x_bth, packed, *, tile_cap=1024):
    """x_bth: [B, T, H] -> [B, 1, 32*T]   (matches the PyTorch NCL output)."""
    W1, W2, W3, B1, B2, B3 = packed
    B, L, H = x_bth.shape
    assert W1.shape == (3, H, 2 * H)
    spr = 32                                   # samples per input row (2*2*8)

    # L-tile size: as big as possible (bounded by tile_cap) while keeping at
    # least ~8 grid steps so v7x's two TensorCores both get work + pipelining.
    nt_target = max(1, _cdiv(8, B))
    tl = min(tile_cap, max(8, _round_up(_cdiv(L, nt_target), 8)))
    lp = _round_up(L, tl)
    nt = lp // tl

    xp = x_bth if lp == L else jnp.pad(x_bth, ((0, 0), (0, lp - L), (0, 0)))

    # Tiny per-tile halo: input rows {t*tl-2, t*tl-1, t*tl+tl, t*tl+tl+1}
    # of the zero-padded sequence -> [B, nt, 4, H].
    x_ext = jnp.pad(xp, ((0, 0), (2, 2), (0, 0)))
    t0 = np.arange(nt) * tl
    idx = np.stack([t0, t0 + 1, t0 + tl + 2, t0 + tl + 3], axis=1)   # [nt, 4]
    halo = x_ext[:, idx]

    kern = functools.partial(_synth_fused_kernel, tl=tl)
    out = pl.pallas_call(
        kern,
        out_shape=jax.ShapeDtypeStruct((B, lp, spr), jnp.float32),
        grid_spec=pltpu.PrefetchScalarGridSpec(
            num_scalar_prefetch=0,
            grid=(B, nt),
            in_specs=[
                pl.BlockSpec((1, tl, H), lambda b, t: (b, t, 0)),
                pl.BlockSpec((1, 1, 4, H), lambda b, t: (b, t, 0, 0)),
                pl.BlockSpec((3, H, 2 * H), lambda b, t: (0, 0, 0)),
                pl.BlockSpec((3, 2 * H, 4 * H), lambda b, t: (0, 0, 0)),
                pl.BlockSpec((3, 4 * H, spr), lambda b, t: (0, 0, 0)),
                pl.BlockSpec((1, 2 * H), lambda b, t: (0, 0)),
                pl.BlockSpec((1, 4 * H), lambda b, t: (0, 0)),
                pl.BlockSpec((1, spr), lambda b, t: (0, 0)),
            ],
            out_specs=pl.BlockSpec((1, tl, spr), lambda b, t: (b, t, 0)),
            scratch_shapes=[
                pltpu.VMEM((tl + 8, H), jnp.float32),        # input window
                pltpu.VMEM((tl + 8, 2 * H), jnp.float32),    # y1, packed by 2
                pltpu.VMEM((tl + 8, 4 * H), jnp.float32),    # y2, packed by 4
            ],
        ),
        compiler_params=pltpu.CompilerParams(
            dimension_semantics=("parallel", "parallel")),
    )(xp, halo, W1, W2, W3, B1, B2, B3)

    # [B, lp, 32] -> [B, 1, 32*L]   (contiguous reshape + slice: layout glue only)
    wave = out.reshape(B, lp * spr)[:, :L * spr]
    return wave[:, None, :]


# ---------------------------------------------------------------------------
# Deterministic parameters mirroring the nn.Module __init__ (eval-mode BN fold)
# ---------------------------------------------------------------------------
def init_params(key, hidden_dim=32, out_channels=1, n_layers=3, eps=1e-5):
    cfgs = []
    for _ in range(n_layers - 1):
        cfgs.append(dict(cin=hidden_dim, cout=hidden_dim, kernel=4, stride=2,
                         pad=1, act="relu", bn=True))
    cfgs.append(dict(cin=hidden_dim, cout=out_channels, kernel=16, stride=8,
                     pad=4, act="tanh", bn=False))

    params = []
    for cfg in cfgs:
        key, kw, kb = jax.random.split(key, 3)
        bound = 1.0 / math.sqrt(cfg["cin"] * cfg["kernel"])
        w = jax.random.uniform(kw, (cfg["cin"], cfg["cout"], cfg["kernel"]),
                               jnp.float32, -bound, bound)
        b = jax.random.uniform(kb, (cfg["cout"],), jnp.float32, -bound, bound)
        if cfg["bn"]:
            gamma = jnp.ones((cfg["cout"],), jnp.float32)
            beta = jnp.zeros((cfg["cout"],), jnp.float32)
            r_mean = jnp.zeros((cfg["cout"],), jnp.float32)
            r_var = jnp.ones((cfg["cout"],), jnp.float32)
            scale = gamma / jnp.sqrt(r_var + eps)
            bias = (b - r_mean) * scale + beta
        else:
            scale = jnp.ones((cfg["cout"],), jnp.float32)
            bias = b
        params.append(dict(w_ciok=w, scale=scale, bias=bias,
                           stride=cfg["stride"], kernel=cfg["kernel"],
                           pad=cfg["pad"], act=cfg["act"]))
    return params


def ref_forward(x_bth, params):
    """Pure-numpy reference of the same (eval-mode) forward pass, NCL layout."""
    x = np.asarray(x_bth, np.float32).transpose(0, 2, 1)   # [B, C, L]
    for p in params:
        w = np.asarray(p["w_ciok"], np.float32)             # [Cin, Cout, K]
        stride, pad = p["stride"], p["pad"]
        Cin, Cout, K = w.shape
        B, _, L = x.shape
        L_out = (L - 1) * stride - 2 * pad + K
        y = np.zeros((B, Cout, L_out), np.float32)
        for l in range(L):
            for j in range(K):
                t = l * stride + j - pad
                if 0 <= t < L_out:
                    y[:, :, t] += np.einsum("bi,io->bo", x[:, :, l], w[:, :, j])
        y = y * np.asarray(p["scale"])[None, :, None] + np.asarray(p["bias"])[None, :, None]
        y = np.maximum(y, 0.0) if p["act"] == "relu" else np.tanh(y)
        x = y
    return x


if __name__ == "__main__":
    H = 32                      # hidden_dim (small test shape)
    key = jax.random.PRNGKey(0)
    key, kp = jax.random.split(key)
    params = init_params(kp, hidden_dim=H, out_channels=1, n_layers=3)
    packed = pack_params(params)        # one-time host-side weight packing

    # Case 1: module-default small shapes (B=2, T=8) - single L-tile per batch.
    key, kx1 = jax.random.split(key)
    x1 = jax.random.normal(kx1, (2, 8, H), jnp.float32)
    fwd1 = jax.jit(lambda inp: audio_synthesizer_forward(inp, packed))
    out1 = jax.block_until_ready(fwd1(x1))
    ref1 = ref_forward(x1, params)
    assert out1.shape == ref1.shape == (2, 1, 8 * 32), (out1.shape, ref1.shape)
    np.testing.assert_allclose(np.asarray(out1), ref1, atol=2e-4, rtol=2e-3)

    # Case 2: several L-tiles (exercises inter-tile halos + sequence edges).
    key, kx2 = jax.random.split(key)
    x2 = jax.random.normal(kx2, (1, 40, H), jnp.float32)
    fwd2 = jax.jit(lambda inp: audio_synthesizer_forward(inp, packed, tile_cap=8))
    out2 = jax.block_until_ready(fwd2(x2))
    ref2 = ref_forward(x2, params)
    assert out2.shape == ref2.shape == (1, 1, 40 * 32), (out2.shape, ref2.shape)
    np.testing.assert_allclose(np.asarray(out2), ref2, atol=2e-4, rtol=2e-3)

    print("KERNEL_OK")
</pallas_src>

<mosaic_0001>
module attributes {stable_mosaic.version = 11 : i64} {
  func.func @_synth_fused_kernel(%arg0: i32, %arg1: i32, %arg2: memref<1x8x32xf32, #tpu.memory_space<vmem>>, %arg3: memref<1x1x4x32xf32, #tpu.memory_space<vmem>>, %arg4: memref<3x32x64xf32, #tpu.memory_space<vmem>>, %arg5: memref<3x64x128xf32, #tpu.memory_space<vmem>>, %arg6: memref<3x128x32xf32, #tpu.memory_space<vmem>>, %arg7: memref<1x64xf32, #tpu.memory_space<vmem>>, %arg8: memref<1x128xf32, #tpu.memory_space<vmem>>, %arg9: memref<1x32xf32, #tpu.memory_space<vmem>>, %arg10: memref<1x8x32xf32, #tpu.memory_space<vmem>>, %arg11: memref<16x32xf32, #tpu.memory_space<vmem>>, %arg12: memref<16x64xf32, #tpu.memory_space<vmem>>, %arg13: memref<16x128xf32, #tpu.memory_space<vmem>>) attributes {dimension_semantics = [#tpu.dimension_semantics<parallel>, #tpu.dimension_semantics<parallel>], iteration_bounds = array<i64: 2, 1>, scalar_prefetch = 0 : i64, scratch_operands = 3 : i64, tpu.core_type = #tpu.core_type<tc>, window_params = [{transform_indices = @transform_0, window_bounds = array<i64: 1, 8, 32>}, {transform_indices = @transform_1, window_bounds = array<i64: 1, 1, 4, 32>}, {pipeline_mode = #tpu.pipeline_mode<synchronous>, transform_indices = @transform_2, window_bounds = array<i64: 3, 32, 64>}, {pipeline_mode = #tpu.pipeline_mode<synchronous>, transform_indices = @transform_3, window_bounds = array<i64: 3, 64, 128>}, {pipeline_mode = #tpu.pipeline_mode<synchronous>, transform_indices = @transform_4, window_bounds = array<i64: 3, 128, 32>}, {pipeline_mode = #tpu.pipeline_mode<synchronous>, transform_indices = @transform_5, window_bounds = array<i64: 1, 64>}, {pipeline_mode = #tpu.pipeline_mode<synchronous>, transform_indices = @transform_6, window_bounds = array<i64: 1, 128>}, {pipeline_mode = #tpu.pipeline_mode<synchronous>, transform_indices = @transform_7, window_bounds = array<i64: 1, 32>}, {transform_indices = @transform_8, window_bounds = array<i64: 1, 8, 32>}]} {
    %c0 = arith.constant 0 : index
    %c0_0 = arith.constant 0 : index
    %c0_1 = arith.constant 0 : index
    %c0_2 = arith.constant 0 : index
    %0 = vector.load %arg3[%c0, %c0_0, %c0_1, %c0_2] : memref<1x1x4x32xf32, #tpu.memory_space<vmem>>, vector<1x1x2x32xf32>
    %1 = vector.shape_cast %0 : vector<1x1x2x32xf32> to vector<2x32xf32>
    %c0_3 = arith.constant 0 : index
    %c0_4 = arith.constant 0 : index
    %2 = vector.load %arg11[%c0_3, %c0_4] : memref<16x32xf32, #tpu.memory_space<vmem>>, vector<2x32xf32>
    tpu.vector_store %arg11[%c0_3, %c0_4], %1 {strides = array<i32>} : memref<16x32xf32, #tpu.memory_space<vmem>>, vector<2x32xf32>,
    %c0_5 = arith.constant 0 : index
    %c0_6 = arith.constant 0 : index
    %c0_7 = arith.constant 0 : index
    %3 = vector.load %arg2[%c0_5, %c0_6, %c0_7] : memref<1x8x32xf32, #tpu.memory_space<vmem>>, vector<1x8x32xf32>
    %4 = vector.shape_cast %3 : vector<1x8x32xf32> to vector<8x32xf32>
    %c2 = arith.constant 2 : index
    %c0_8 = arith.constant 0 : index
    %5 = vector.load %arg11[%c2, %c0_8] : memref<16x32xf32, #tpu.memory_space<vmem>>, vector<8x32xf32>
    tpu.vector_store %arg11[%c2, %c0_8], %4 {strides = array<i32>} : memref<16x32xf32, #tpu.memory_space<vmem>>, vector<8x32xf32>,
    %c0_9 = arith.constant 0 : index
    %c0_10 = arith.constant 0 : index
    %c2_11 = arith.constant 2 : index
    %c0_12 = arith.constant 0 : index
    %6 = vector.load %arg3[%c0_9, %c0_10, %c2_11, %c0_12] : memref<1x1x4x32xf32, #tpu.memory_space<vmem>>, vector<1x1x2x32xf32>
    %7 = vector.shape_cast %6 : vector<1x1x2x32xf32> to vector<2x32xf32>
    %c10 = arith.constant 10 : index
    %c0_13 = arith.constant 0 : index
    %8 = vector.load %arg11[%c10, %c0_13] : memref<16x32xf32, #tpu.memory_space<vmem>>, vector<2x32xf32>
    tpu.vector_store %arg11[%c10, %c0_13], %7 {strides = array<i32>} : memref<16x32xf32, #tpu.memory_space<vmem>>, vector<2x32xf32>,
    %c2_14 = arith.constant 2 : index
    %c0_15 = arith.constant 0 : index
    %9 = vector.load %arg11[%c2_14, %c0_15] : memref<16x32xf32, #tpu.memory_space<vmem>>, vector<10x32xf32>
    %c0_16 = arith.constant 0 : index
    %c0_17 = arith.constant 0 : index
    %c0_18 = arith.constant 0 : index
    %10 = vector.load %arg4[%c0_16, %c0_17, %c0_18] : memref<3x32x64xf32, #tpu.memory_space<vmem>>, vector<1x32x64xf32>
    %11 = vector.shape_cast %10 : vector<1x32x64xf32> to vector<32x64xf32>
    %cst = arith.constant dense<0.000000e+00> : vector<10x64xf32>
    %12 = tpu.matmul %9, %11, %cst {dimension_numbers = #tpu.dot_dimension_numbers<[1], [0], [0], [1], [0, 0, 1, 1], [], []>} : vector<10x32xf32>, vector<32x64xf32>, vector<10x64xf32> -> vector<10x64xf32>
    %c1 = arith.constant 1 : index
    %c0_19 = arith.constant 0 : index
    %13 = vector.load %arg11[%c1, %c0_19] : memref<16x32xf32, #tpu.memory_space<vmem>>, vector<10x32xf32>
    %c1_20 = arith.constant 1 : index
    %c0_21 = arith.constant 0 : index
    %c0_22 = arith.constant 0 : index
    %14 = vector.load %arg4[%c1_20, %c0_21, %c0_22] : memref<3x32x64xf32, #tpu.memory_space<vmem>>, vector<1x32x64xf32>
    %15 = vector.shape_cast %14 : vector<1x32x64xf32> to vector<32x64xf32>
    %cst_23 = arith.constant dense<0.000000e+00> : vector<10x64xf32>
    %16 = tpu.matmul %13, %15, %cst_23 {dimension_numbers = #tpu.dot_dimension_numbers<[1], [0], [0], [1], [0, 0, 1, 1], [], []>} : vector<10x32xf32>, vector<32x64xf32>, vector<10x64xf32> -> vector<10x64xf32>
    %17 = arith.addf %12, %16 : vector<10x64xf32>
    %c0_24 = arith.constant 0 : index
    %c0_25 = arith.constant 0 : index
    %18 = vector.load %arg11[%c0_24, %c0_25] : memref<16x32xf32, #tpu.memory_space<vmem>>, vector<10x32xf32>
    %c2_26 = arith.constant 2 : index
    %c0_27 = arith.constant 0 : index
    %c0_28 = arith.constant 0 : index
    %19 = vector.load %arg4[%c2_26, %c0_27, %c0_28] : memref<3x32x64xf32, #tpu.memory_space<vmem>>, vector<1x32x64xf32>
    %20 = vector.shape_cast %19 : vector<1x32x64xf32> to vector<32x64xf32>
    %cst_29 = arith.constant dense<0.000000e+00> : vector<10x64xf32>
    %21 = tpu.matmul %18, %20, %cst_29 {dimension_numbers = #tpu.dot_dimension_numbers<[1], [0], [0], [1], [0, 0, 1, 1], [], []>} : vector<10x32xf32>, vector<32x64xf32>, vector<10x64xf32> -> vector<10x64xf32>
    %22 = arith.addf %17, %21 : vector<10x64xf32>
    %c0_30 = arith.constant 0 : index
    %c0_31 = arith.constant 0 : index
    %23 = vector.load %arg7[%c0_30, %c0_31] : memref<1x64xf32, #tpu.memory_space<vmem>>, vector<1x64xf32>
    %24 = vector.shape_cast %23 : vector<1x64xf32> to vector<64xf32>
    %25 = vector.shape_cast %24 : vector<64xf32> to vector<1x64xf32>
    %26 = vector.broadcast %25 : vector<1x64xf32> to vector<10x64xf32>
    %27 = arith.addf %22, %26 : vector<10x64xf32>
    %cst_32 = arith.constant 0.000000e+00 : f32
    %28 = vector.broadcast %cst_32 : f32 to vector<10x64xf32>
    %29 = arith.maximumf %27, %28 : vector<10x64xf32>
    %cst_33 = arith.constant 0.000000e+00 : f32
    %30 = vector.broadcast %cst_33 : f32 to vector<1x64xf32>
    %c0_34 = arith.constant 0 : index
    %c0_35 = arith.constant 0 : index
    %31 = vector.load %arg12[%c0_34, %c0_35] : memref<16x64xf32, #tpu.memory_space<vmem>>, vector<1x64xf32>
    tpu.vector_store %arg12[%c0_34, %c0_35], %30 {strides = array<i32>} : memref<16x64xf32, #tpu.memory_space<vmem>>, vector<1x64xf32>,
    %c1_36 = arith.constant 1 : index
    %c0_37 = arith.constant 0 : index
    %32 = vector.load %arg12[%c1_36, %c0_37] : memref<16x64xf32, #tpu.memory_space<vmem>>, vector<10x64xf32>
    tpu.vector_store %arg12[%c1_36, %c0_37], %29 {strides = array<i32>} : memref<16x64xf32, #tpu.memory_space<vmem>>, vector<10x64xf32>,
    %cst_38 = arith.constant 0.000000e+00 : f32
    %33 = vector.broadcast %cst_38 : f32 to vector<1x64xf32>
    %c11 = arith.constant 11 : index
    %c0_39 = arith.constant 0 : index
    %34 = vector.load %arg12[%c11, %c0_39] : memref<16x64xf32, #tpu.memory_space<vmem>>, vector<1x64xf32>
    tpu.vector_store %arg12[%c11, %c0_39], %33 {strides = array<i32>} : memref<16x64xf32, #tpu.memory_space<vmem>>, vector<1x64xf32>,
    %c0_i32 = arith.constant 0 : i32
    %35 = arith.cmpi eq, %arg1, %c0_i32 : i32
    %36 = arith.extui %35 : i1 to i32
    %c0_i32_40 = arith.constant 0 : i32
    %37 = arith.cmpi ne, %36, %c0_i32_40 : i32
    scf.if %37 {
      %cst_93 = arith.constant 0.000000e+00 : f32
      %92 = vector.broadcast %cst_93 : f32 to vector<1x64xf32>
      %c1_94 = arith.constant 1 : index
      %c0_95 = arith.constant 0 : index
      %93 = vector.load %arg12[%c1_94, %c0_95] : memref<16x64xf32, #tpu.memory_space<vmem>>, vector<1x64xf32>
      tpu.vector_store %arg12[%c1_94, %c0_95], %92 {strides = array<i32>} : memref<16x64xf32, #tpu.memory_space<vmem>>, vector<1x64xf32>,
    } else {
    }
    %c0_i32_41 = arith.constant 0 : i32
    %38 = arith.cmpi eq, %arg1, %c0_i32_41 : i32
    %39 = arith.extui %38 : i1 to i32
    %c0_i32_42 = arith.constant 0 : i32
    %40 = arith.cmpi ne, %39, %c0_i32_42 : i32
    scf.if %40 {
      %cst_93 = arith.constant 0.000000e+00 : f32
      %92 = vector.broadcast %cst_93 : f32 to vector<1x64xf32>
      %c10_94 = arith.constant 10 : index
      %c0_95 = arith.constant 0 : index
      %93 = vector.load %arg12[%c10_94, %c0_95] : memref<16x64xf32, #tpu.memory_space<vmem>>, vector<1x64xf32>
      tpu.vector_store %arg12[%c10_94, %c0_95], %92 {strides = array<i32>} : memref<16x64xf32, #tpu.memory_space<vmem>>, vector<1x64xf32>,
    } else {
    }
    %c0_43 = arith.constant 0 : index
    %c0_44 = arith.constant 0 : index
    %41 = vector.load %arg12[%c0_43, %c0_44] : memref<16x64xf32, #tpu.memory_space<vmem>>, vector<10x64xf32>
    %c0_45 = arith.constant 0 : index
    %c0_46 = arith.constant 0 : index
    %c0_47 = arith.constant 0 : index
    %42 = vector.load %arg5[%c0_45, %c0_46, %c0_47] : memref<3x64x128xf32, #tpu.memory_space<vmem>>, vector<1x64x128xf32>
    %43 = vector.shape_cast %42 : vector<1x64x128xf32> to vector<64x128xf32>
    %cst_48 = arith.constant dense<0.000000e+00> : vector<10x128xf32>
    %44 = tpu.matmul %41, %43, %cst_48 {dimension_numbers = #tpu.dot_dimension_numbers<[1], [0], [0], [1], [0, 0, 1, 1], [], []>} : vector<10x64xf32>, vector<64x128xf32>, vector<10x128xf32> -> vector<10x128xf32>
    %c1_49 = arith.constant 1 : index
    %c0_50 = arith.constant 0 : index
    %45 = vector.load %arg12[%c1_49, %c0_50] : memref<16x64xf32, #tpu.memory_space<vmem>>, vector<10x64xf32>
    %c1_51 = arith.constant 1 : index
    %c0_52 = arith.constant 0 : index
    %c0_53 = arith.constant 0 : index
    %46 = vector.load %arg5[%c1_51, %c0_52, %c0_53] : memref<3x64x128xf32, #tpu.memory_space<vmem>>, vector<1x64x128xf32>
    %47 = vector.shape_cast %46 : vector<1x64x128xf32> to vector<64x128xf32>
    %cst_54 = arith.constant dense<0.000000e+00> : vector<10x128xf32>
    %48 = tpu.matmul %45, %47, %cst_54 {dimension_numbers = #tpu.dot_dimension_numbers<[1], [0], [0], [1], [0, 0, 1, 1], [], []>} : vector<10x64xf32>, vector<64x128xf32>, vector<10x128xf32> -> vector<10x128xf32>
    %49 = arith.addf %44, %48 : vector<10x128xf32>
    %c2_55 = arith.constant 2 : index
    %c0_56 = arith.constant 0 : index
    %50 = vector.load %arg12[%c2_55, %c0_56] : memref<16x64xf32, #tpu.memory_space<vmem>>, vector<10x64xf32>
    %c2_57 = arith.constant 2 : index
    %c0_58 = arith.constant 0 : index
    %c0_59 = arith.constant 0 : index
    %51 = vector.load %arg5[%c2_57, %c0_58, %c0_59] : memref<3x64x128xf32, #tpu.memory_space<vmem>>, vector<1x64x128xf32>
    %52 = vector.shape_cast %51 : vector<1x64x128xf32> to vector<64x128xf32>
    %cst_60 = arith.constant dense<0.000000e+00> : vector<10x128xf32>
    %53 = tpu.matmul %50, %52, %cst_60 {dimension_numbers = #tpu.dot_dimension_numbers<[1], [0], [0], [1], [0, 0, 1, 1], [], []>} : vector<10x64xf32>, vector<64x128xf32>, vector<10x128xf32> -> vector<10x128xf32>
    %54 = arith.addf %49, %53 : vector<10x128xf32>
    %c0_61 = arith.constant 0 : index
    %c0_62 = arith.constant 0 : index
    %55 = vector.load %arg8[%c0_61, %c0_62] : memref<1x128xf32, #tpu.memory_space<vmem>>, vector<1x128xf32>
    %56 = vector.shape_cast %55 : vector<1x128xf32> to vector<128xf32>
    %57 = vector.shape_cast %56 : vector<128xf32> to vector<1x128xf32>
    %58 = vector.broadcast %57 : vector<1x128xf32> to vector<10x128xf32>
    %59 = arith.addf %54, %58 : vector<10x128xf32>
    %cst_63 = arith.constant 0.000000e+00 : f32
    %60 = vector.broadcast %cst_63 : f32 to vector<10x128xf32>
    %61 = arith.maximumf %59, %60 : vector<10x128xf32>
    %c0_64 = arith.constant 0 : index
    %c0_65 = arith.constant 0 : index
    %62 = vector.load %arg13[%c0_64, %c0_65] : memref<16x128xf32, #tpu.memory_space<vmem>>, vector<10x128xf32>
    tpu.vector_store %arg13[%c0_64, %c0_65], %61 {strides = array<i32>} : memref<16x128xf32, #tpu.memory_space<vmem>>, vector<10x128xf32>,
    %c0_i32_66 = arith.constant 0 : i32
    %63 = arith.cmpi eq, %arg1, %c0_i32_66 : i32
    %64 = arith.extui %63 : i1 to i32
    %c0_i32_67 = arith.constant 0 : i32
    %65 = arith.cmpi ne, %64, %c0_i32_67 : i32
    scf.if %65 {
      %cst_93 = arith.constant 0.000000e+00 : f32
      %92 = vector.broadcast %cst_93 : f32 to vector<1x128xf32>
      %c0_94 = arith.constant 0 : index
      %c0_95 = arith.constant 0 : index
      %93 = vector.load %arg13[%c0_94, %c0_95] : memref<16x128xf32, #tpu.memory_space<vmem>>, vector<1x128xf32>
      tpu.vector_store %arg13[%c0_94, %c0_95], %92 {strides = array<i32>} : memref<16x128xf32, #tpu.memory_space<vmem>>, vector<1x128xf32>,
    } else {
    }
    %c0_i32_68 = arith.constant 0 : i32
    %66 = arith.cmpi eq, %arg1, %c0_i32_68 : i32
    %67 = arith.extui %66 : i1 to i32
    %c0_i32_69 = arith.constant 0 : i32
    %68 = arith.cmpi ne, %67, %c0_i32_69 : i32
    scf.if %68 {
      %cst_93 = arith.constant 0.000000e+00 : f32
      %92 = vector.broadcast %cst_93 : f32 to vector<1x128xf32>
      %c9 = arith.constant 9 : index
      %c0_94 = arith.constant 0 : index
      %93 = vector.load %arg13[%c9, %c0_94] : memref<16x128xf32, #tpu.memory_space<vmem>>, vector<1x128xf32>
      tpu.vector_store %arg13[%c9, %c0_94], %92 {strides = array<i32>} : memref<16x128xf32, #tpu.memory_space<vmem>>, vector<1x128xf32>,
    } else {
    }
    %c0_70 = arith.constant 0 : index
    %c0_71 = arith.constant 0 : index
    %69 = vector.load %arg13[%c0_70, %c0_71] : memref<16x128xf32, #tpu.memory_space<vmem>>, vector<8x128xf32>
    %c0_72 = arith.constant 0 : index
    %c0_73 = arith.constant 0 : index
    %c0_74 = arith.constant 0 : index
    %70 = vector.load %arg6[%c0_72, %c0_73, %c0_74] : memref<3x128x32xf32, #tpu.memory_space<vmem>>, vector<1x128x32xf32>
    %71 = vector.shape_cast %70 : vector<1x128x32xf32> to vector<128x32xf32>
    %cst_75 = arith.constant dense<0.000000e+00> : vector<8x32xf32>
    %72 = tpu.matmul %69, %71, %cst_75 {dimension_numbers = #tpu.dot_dimension_numbers<[1], [0], [0], [1], [0, 0, 1, 1], [], []>} : vector<8x128xf32>, vector<128x32xf32>, vector<8x32xf32> -> vector<8x32xf32>
    %c1_76 = arith.constant 1 : index
    %c0_77 = arith.constant 0 : index
    %73 = vector.load %arg13[%c1_76, %c0_77] : memref<16x128xf32, #tpu.memory_space<vmem>>, vector<8x128xf32>
    %c1_78 = arith.constant 1 : index
    %c0_79 = arith.constant 0 : index
    %c0_80 = arith.constant 0 : index
    %74 = vector.load %arg6[%c1_78, %c0_79, %c0_80] : memref<3x128x32xf32, #tpu.memory_space<vmem>>, vector<1x128x32xf32>
    %75 = vector.shape_cast %74 : vector<1x128x32xf32> to vector<128x32xf32>
    %cst_81 = arith.constant dense<0.000000e+00> : vector<8x32xf32>
    %76 = tpu.matmul %73, %75, %cst_81 {dimension_numbers = #tpu.dot_dimension_numbers<[1], [0], [0], [1], [0, 0, 1, 1], [], []>} : vector<8x128xf32>, vector<128x32xf32>, vector<8x32xf32> -> vector<8x32xf32>
    %77 = arith.addf %72, %76 : vector<8x32xf32>
    %c2_82 = arith.constant 2 : index
    %c0_83 = arith.constant 0 : index
    %78 = vector.load %arg13[%c2_82, %c0_83] : memref<16x128xf32, #tpu.memory_space<vmem>>, vector<8x128xf32>
    %c2_84 = arith.constant 2 : index
    %c0_85 = arith.constant 0 : index
    %c0_86 = arith.constant 0 : index
    %79 = vector.load %arg6[%c2_84, %c0_85, %c0_86] : memref<3x128x32xf32, #tpu.memory_space<vmem>>, vector<1x128x32xf32>
    %80 = vector.shape_cast %79 : vector<1x128x32xf32> to vector<128x32xf32>
    %cst_87 = arith.constant dense<0.000000e+00> : vector<8x32xf32>
    %81 = tpu.matmul %78, %80, %cst_87 {dimension_numbers = #tpu.dot_dimension_numbers<[1], [0], [0], [1], [0, 0, 1, 1], [], []>} : vector<8x128xf32>, vector<128x32xf32>, vector<8x32xf32> -> vector<8x32xf32>
    %82 = arith.addf %77, %81 : vector<8x32xf32>
    %c0_88 = arith.constant 0 : index
    %c0_89 = arith.constant 0 : index
    %83 = vector.load %arg9[%c0_88, %c0_89] : memref<1x32xf32, #tpu.memory_space<vmem>>, vector<1x32xf32>
    %84 = vector.shape_cast %83 : vector<1x32xf32> to vector<32xf32>
    %85 = vector.shape_cast %84 : vector<32xf32> to vector<1x32xf32>
    %86 = vector.broadcast %85 : vector<1x32xf32> to vector<8x32xf32>
    %87 = arith.addf %82, %86 : vector<8x32xf32>
    %88 = math.tanh %87 : vector<8x32xf32>
    %c0_90 = arith.constant 0 : index
    %c0_91 = arith.constant 0 : index
    %c0_92 = arith.constant 0 : index
    %89 = vector.load %arg10[%c0_90, %c0_91, %c0_92] : memref<1x8x32xf32, #tpu.memory_space<vmem>>, vector<1x8x32xf32>
    %90 = vector.shape_cast %89 : vector<1x8x32xf32> to vector<8x32xf32>
    %91 = vector.shape_cast %88 : vector<8x32xf32> to vector<1x8x32xf32>
    tpu.vector_store %arg10[%c0_90, %c0_91, %c0_92], %91 {strides = array<i32>} : memref<1x8x32xf32, #tpu.memory_space<vmem>>, vector<1x8x32xf32>,
    return
  }
  func.func @transform_0(%arg0: i32, %arg1: i32) -> (i32, i32, i32) {
    %c0_i32 = arith.constant 0 : i32
    %c0_i32_0 = arith.constant 0 : i32
    return %arg0, %arg1, %c0_i32 : i32, i32, i32
  }
  func.func @transform_1(%arg0: i32, %arg1: i32) -> (i32, i32, i32, i32) {
    %c0_i32 = arith.constant 0 : i32
    %c0_i32_0 = arith.constant 0 : i32
    %c0_i32_1 = arith.constant 0 : i32
    return %arg0, %arg1, %c0_i32, %c0_i32_0 : i32, i32, i32, i32
  }
  func.func @transform_2(%arg0: i32, %arg1: i32) -> (i32, i32, i32) {
    %c0_i32 = arith.constant 0 : i32
    %c0_i32_0 = arith.constant 0 : i32
    %c0_i32_1 = arith.constant 0 : i32
    %c0_i32_2 = arith.constant 0 : i32
    return %c0_i32, %c0_i32_0, %c0_i32_1 : i32, i32, i32
  }
  func.func @transform_3(%arg0: i32, %arg1: i32) -> (i32, i32, i32) {
    %c0_i32 = arith.constant 0 : i32
    %c0_i32_0 = arith.constant 0 : i32
    %c0_i32_1 = arith.constant 0 : i32
    %c0_i32_2 = arith.constant 0 : i32
    return %c0_i32, %c0_i32_0, %c0_i32_1 : i32, i32, i32
  }
  func.func @transform_4(%arg0: i32, %arg1: i32) -> (i32, i32, i32) {
    %c0_i32 = arith.constant 0 : i32
    %c0_i32_0 = arith.constant 0 : i32
    %c0_i32_1 = arith.constant 0 : i32
    %c0_i32_2 = arith.constant 0 : i32
    return %c0_i32, %c0_i32_0, %c0_i32_1 : i32, i32, i32
  }
  func.func @transform_5(%arg0: i32, %arg1: i32) -> (i32, i32) {
    %c0_i32 = arith.constant 0 : i32
    %c0_i32_0 = arith.constant 0 : i32
    %c0_i32_1 = arith.constant 0 : i32
    return %c0_i32, %c0_i32_0 : i32, i32
  }
  func.func @transform_6(%arg0: i32, %arg1: i32) -> (i32, i32) {
    %c0_i32 = arith.constant 0 : i32
    %c0_i32_0 = arith.constant 0 : i32
    %c0_i32_1 = arith.constant 0 : i32
    return %c0_i32, %c0_i32_0 : i32, i32
  }
  func.func @transform_7(%arg0: i32, %arg1: i32) -> (i32, i32) {
    %c0_i32 = arith.constant 0 : i32
    %c0_i32_0 = arith.constant 0 : i32
    %c0_i32_1 = arith.constant 0 : i32
    return %c0_i32, %c0_i32_0 : i32, i32
  }
  func.func @transform_8(%arg0: i32, %arg1: i32) -> (i32, i32, i32) {
    %c0_i32 = arith.constant 0 : i32
    %c0_i32_0 = arith.constant 0 : i32
    return %arg0, %arg1, %c0_i32 : i32, i32, i32
  }
}

</mosaic_0001>

<llo_original>
// kernel: _lambda_.1
$region0: #{_lambda_.1}
  #allocation0 [shape = 'u32[]', space=smem, size = 0x4, offset = 0x4, fixed_abs, tag = 'smem constant byte address 0x4 - core index']
  #allocation1 [shape = 'u32[144,128]{1,0:T(1,128)}', space=vmem, size = 0x12000, scoped, tag = 'internal scratch']
  #allocation2 [shape = 'f32[16,32]{1,0:T(8,128)}', space=vmem, size = 0x2000, scoped, tag = 'scratch operand']
  #allocation3 [shape = 'f32[16,64]{1,0:T(8,128)}', space=vmem, size = 0x2000, scoped, tag = 'scratch operand']
  #allocation4 [shape = 'f32[16,128]{1,0:T(8,128)}', space=vmem, size = 0x2000, scoped, tag = 'scratch operand']
  %s0 = inlined_call_operand.vmem [shape: f32[2,8,32], index: 0, kind: input, shape index: {}]
  %s1 = inlined_call_operand.vmem [shape: f32[2,1,4,32], index: 1, kind: input, shape index: {}]
  %s2 = inlined_call_operand.vmem [shape: f32[3,32,64], index: 2, kind: input, shape index: {}]
  %s3 = inlined_call_operand.hbm [shape: f32[3,64,128], index: 3, kind: input, shape index: {}]
  %s4 = inlined_call_operand.hbm [shape: f32[3,128,32], index: 4, kind: input, shape index: {}]
  %s5 = inlined_call_operand.vmem [shape: f32[1,64], index: 5, kind: input, shape index: {}]
  %s6 = inlined_call_operand.vmem [shape: f32[1,128], index: 6, kind: input, shape index: {}]
  %s7 = inlined_call_operand.vmem [shape: f32[1,32], index: 7, kind: input, shape index: {}]
  %s8 = inlined_call_operand.vmem [shape: f32[2,8,32], index: 8, kind: output, shape index: {}]
  %s9 = sld [smem:[#allocation0]]
  $region81: #{_lambda_.1} parent=0
    _
  %s11 = ssub.s32 1, %s9
  %s12 = scalar_select 0, %s11, %s9
  $region1: #{_lambda_.1} parent=0
    #allocation5 [shape = 'u8[98304]{0}', space=vmem, size = 0x18000, scoped, tag = 'input window, operand 3, single buffered']
    #allocation6 [shape = 's32[2]{0}', space=sflag, size = 0x8, scoped, tag = 'scoped memory for _lambda_.1']
    #allocation7 [shape = 'u8[196608]{0}', space=vmem, size = 0x30000, scoped, tag = 'input window, operand 4, single buffered']
    #allocation8 [shape = 's32[1]{0}', space=sflag, size = 0x4, scoped, tag = 'scoped memory for _lambda_.1']
    %13 = vsyncpa [#allocation6], 0
    %14 = vsyncpa [#allocation8], 0
    loop: start=0, step=1, limit=4
    $region2: #{_lambda_.1} parent=1 // loop_pre_header
      _
    $region3: #{_lambda_.1} parent=1 // loop_header
      %s16 = sphi 0, %s20
      %p17 = scmp.ge.s32.totalorder %s16, 4
      %s23 = sphi 0, %s35
      %s24 = sphi 0, %s31
      %s25 = sphi 0, %s23
      %s26 = sphi 0, %s24
      %s27 = sphi 0, %s25
      %s28 = sphi 0, %s26
      %s40 = sphi 0, %s42
      %s43 = sphi 0, %s40
      %s44 = sphi 0, %s43
      %s60 = sphi 0, %s44
      %s68 = sphi 0, %s70
      %s71 = sphi 0, %s68
      %s72 = sphi 0, %s71
      %s88 = sphi 0, %s72
      %s92 = sphi 0, %s92
      %s94 = sphi 0, %s92
      %s95 = sphi 0, %s94
      %s109 = sphi 0, %s95
      %s113 = sphi 0, %s113
      %s115 = sphi 0, %s113
      %s116 = sphi 0, %s115
      %s130 = sphi 0, %s116
      %s134 = sphi 0, %s134
      %s136 = sphi 0, %s134
      %s137 = sphi 0, %s136
      %s151 = sphi 0, %s137
      %s155 = sphi 0, %s155
      %s157 = sphi 0, %s155
      %s158 = sphi 0, %s157
      %s172 = sphi 0, %s158
      %s176 = sphi 0, %s176
      %s178 = sphi 0, %s176
      %s179 = sphi 0, %s178
      %s193 = sphi 0, %s179
      %s197 = sphi 0, %s197
      %s199 = sphi 0, %s197
      %s200 = sphi 0, %s199
      %s214 = sphi 0, %s200
      %s222 = sphi 0, %s224
      %s225 = sphi 0, %s222
      %s226 = sphi 0, %s225
      %s242 = sphi 0, %s226
    $region4: #{_lambda_.1} parent=1 // loop_header_branch
      %19 = sbr.rel (%p17) target = $region8
    $region5: #{_lambda_.1} parent=1 // loop_body
      %s21 = ssub.s32 %s16, 1
      %s22 = ssub.s32 %s16, 2
      %s29 = sadd.s32 1, %s24
      %p30 = scmp.ge.s32.totalorder %s29, 1
      %s31 = scalar_select %p30, 0, %s29
      %s32 = sadd.s32 1, %s23
      %s33 = scalar_select %p30, %s32, %s23
      %p34 = scmp.ge.s32.totalorder %s33, 2
      %s35 = scalar_select %p34, 0, %s33
      %s36 = ssub.s32 %s23, %s35
      %s37 = ssub.s32 %s24, %s31
      %s38 = sor.u32 %s36, %s37
      %p39 = scmp.eq.s32.totalorder %s38, 0
      %s41 = sadd.s32 %s40, 1
      %s42 = scalar_select %p39, %s40, %s41
      %p45 = pneg %p39
      %p46 = scmp.eq.s32.totalorder %s16, 1
      %p47 = por %p45, %p46
      %p48 = scmp.ne.s32.totalorder %s40, %s43
      %p49 = scmp.eq.s32.totalorder %s16, 0
      %p50 = por %p48, %p49
      %p51 = scmp.ne.s32.totalorder %s40, %s43
      %p52 = scmp.eq.s32.totalorder %s21, 1
      %p53 = por %p51, %p52
      %p54 = scmp.ne.s32.totalorder %s43, %s44
      %p55 = scmp.eq.s32.totalorder %s21, 0
      %p56 = por %p54, %p55
      %p57 = scmp.ne.s32.totalorder %s43, %s44
      %p58 = scmp.eq.s32.totalorder %s22, 1
      %p59 = por %p57, %p58
      %p61 = scmp.ne.s32.totalorder %s44, %s60
      %p62 = scmp.eq.s32.totalorder %s22, 0
      %p63 = por %p61, %p62
      %s64 = ssub.s32 %s23, %s35
      %s65 = ssub.s32 %s24, %s31
      %s66 = sor.u32 %s64, %s65
      %p67 = scmp.eq.s32.totalorder %s66, 0
      %s69 = sadd.s32 %s68, 1
      %s70 = scalar_select %p67, %s68, %s69
      %p73 = pneg %p67
      %p74 = scmp.eq.s32.totalorder %s16, 1
      %p75 = por %p73, %p74
      %p76 = scmp.ne.s32.totalorder %s68, %s71
      %p77 = scmp.eq.s32.totalorder %s16, 0
      %p78 = por %p76, %p77
      %p79 = scmp.ne.s32.totalorder %s68, %s71
      %p80 = scmp.eq.s32.totalorder %s21, 1
      %p81 = por %p79, %p80
      %p82 = scmp.ne.s32.totalorder %s71, %s72
      %p83 = scmp.eq.s32.totalorder %s21, 0
      %p84 = por %p82, %p83
      %p85 = scmp.ne.s32.totalorder %s71, %s72
      %p86 = scmp.eq.s32.totalorder %s22, 1
      %p87 = por %p85, %p86
      %p89 = scmp.ne.s32.totalorder %s72, %s88
      %p90 = scmp.eq.s32.totalorder %s22, 0
      %p91 = por %p89, %p90
      %s93 = sadd.s32 %s92, 1
      %p96 = scmp.eq.s32.totalorder %s16, 1
      %p97 = scmp.ne.s32.totalorder %s92, %s94
      %p98 = scmp.eq.s32.totalorder %s16, 0
      %p99 = por %p97, %p98
      %p100 = scmp.ne.s32.totalorder %s92, %s94
      %p101 = scmp.eq.s32.totalorder %s21, 1
      %p102 = por %p100, %p101
      %p103 = scmp.ne.s32.totalorder %s94, %s95
      %p104 = scmp.eq.s32.totalorder %s21, 0
      %p105 = por %p103, %p104
      %p106 = scmp.ne.s32.totalorder %s94, %s95
      %p107 = scmp.eq.s32.totalorder %s22, 1
      %p108 = por %p106, %p107
      %p110 = scmp.ne.s32.totalorder %s95, %s109
      %p111 = scmp.eq.s32.totalorder %s22, 0
      %p112 = por %p110, %p111
      %s114 = sadd.s32 %s113, 1
      %p117 = scmp.eq.s32.totalorder %s16, 1
      %p118 = scmp.ne.s32.totalorder %s113, %s115
      %p119 = scmp.eq.s32.totalorder %s16, 0
      %p120 = por %p118, %p119
      %p121 = scmp.ne.s32.totalorder %s113, %s115
      %p122 = scmp.eq.s32.totalorder %s21, 1
      %p123 = por %p121, %p122
      %p124 = scmp.ne.s32.totalorder %s115, %s116
      %p125 = scmp.eq.s32.totalorder %s21, 0
      %p126 = por %p124, %p125
      %p127 = scmp.ne.s32.totalorder %s115, %s116
      %p128 = scmp.eq.s32.totalorder %s22, 1
      %p129 = por %p127, %p128
      %p131 = scmp.ne.s32.totalorder %s116, %s130
      %p132 = scmp.eq.s32.totalorder %s22, 0
      %p133 = por %p131, %p132
      %s135 = sadd.s32 %s134, 1
      %p138 = scmp.eq.s32.totalorder %s16, 1
      %p139 = scmp.ne.s32.totalorder %s134, %s136
      %p140 = scmp.eq.s32.totalorder %s16, 0
      %p141 = por %p139, %p140
      %p142 = scmp.ne.s32.totalorder %s134, %s136
      %p143 = scmp.eq.s32.totalorder %s21, 1
      %p144 = por %p142, %p143
      %p145 = scmp.ne.s32.totalorder %s136, %s137
      %p146 = scmp.eq.s32.totalorder %s21, 0
      %p147 = por %p145, %p146
      %p148 = scmp.ne.s32.totalorder %s136, %s137
      %p149 = scmp.eq.s32.totalorder %s22, 1
      %p150 = por %p148, %p149
      %p152 = scmp.ne.s32.totalorder %s137, %s151
      %p153 = scmp.eq.s32.totalorder %s22, 0
      %p154 = por %p152, %p153
      %s156 = sadd.s32 %s155, 1
      %p159 = scmp.eq.s32.totalorder %s16, 1
      %p160 = scmp.ne.s32.totalorder %s155, %s157
      %p161 = scmp.eq.s32.totalorder %s16, 0
      %p162 = por %p160, %p161
      %p163 = scmp.ne.s32.totalorder %s155, %s157
      %p164 = scmp.eq.s32.totalorder %s21, 1
      %p165 = por %p163, %p164
      %p166 = scmp.ne.s32.totalorder %s157, %s158
      %p167 = scmp.eq.s32.totalorder %s21, 0
      %p168 = por %p166, %p167
      %p169 = scmp.ne.s32.totalorder %s157, %s158
      %p170 = scmp.eq.s32.totalorder %s22, 1
      %p171 = por %p169, %p170
      %p173 = scmp.ne.s32.totalorder %s158, %s172
      %p174 = scmp.eq.s32.totalorder %s22, 0
      %p175 = por %p173, %p174
      %s177 = sadd.s32 %s176, 1
      %p180 = scmp.eq.s32.totalorder %s16, 1
      %p181 = scmp.ne.s32.totalorder %s176, %s178
      %p182 = scmp.eq.s32.totalorder %s16, 0
      %p183 = por %p181, %p182
      %p184 = scmp.ne.s32.totalorder %s176, %s178
      %p185 = scmp.eq.s32.totalorder %s21, 1
      %p186 = por %p184, %p185
      %p187 = scmp.ne.s32.totalorder %s178, %s179
      %p188 = scmp.eq.s32.totalorder %s21, 0
      %p189 = por %p187, %p188
      %p190 = scmp.ne.s32.totalorder %s178, %s179
      %p191 = scmp.eq.s32.totalorder %s22, 1
      %p192 = por %p190, %p191
      %p194 = scmp.ne.s32.totalorder %s179, %s193
      %p195 = scmp.eq.s32.totalorder %s22, 0
      %p196 = por %p194, %p195
      %s198 = sadd.s32 %s197, 1
      %p201 = scmp.eq.s32.totalorder %s16, 1
      %p202 = scmp.ne.s32.totalorder %s197, %s199
      %p203 = scmp.eq.s32.totalorder %s16, 0
      %p204 = por %p202, %p203
      %p205 = scmp.ne.s32.totalorder %s197, %s199
      %p206 = scmp.eq.s32.totalorder %s21, 1
      %p207 = por %p205, %p206
      %p208 = scmp.ne.s32.totalorder %s199, %s200
      %p209 = scmp.eq.s32.totalorder %s21, 0
      %p210 = por %p208, %p209
      %p211 = scmp.ne.s32.totalorder %s199, %s200
      %p212 = scmp.eq.s32.totalorder %s22, 1
      %p213 = por %p211, %p212
      %p215 = scmp.ne.s32.totalorder %s200, %s214
      %p216 = scmp.eq.s32.totalorder %s22, 0
      %p217 = por %p215, %p216
      %s218 = ssub.s32 %s23, %s35
      %s219 = ssub.s32 %s24, %s31
      %s220 = sor.u32 %s218, %s219
      %p221 = scmp.eq.s32.totalorder %s220, 0
      %s223 = sadd.s32 %s222, 1
      %s224 = scalar_select %p221, %s222, %s223
      %p227 = pneg %p221
      %p228 = scmp.eq.s32.totalorder %s16, 1
      %p229 = por %p227, %p228
      %p230 = scmp.ne.s32.totalorder %s222, %s225
      %p231 = scmp.eq.s32.totalorder %s16, 0
      %p232 = por %p230, %p231
      %p233 = scmp.ne.s32.totalorder %s222, %s225
      %p234 = scmp.eq.s32.totalorder %s21, 1
      %p235 = por %p233, %p234
      %p236 = scmp.ne.s32.totalorder %s225, %s226
      %p237 = scmp.eq.s32.totalorder %s21, 0
      %p238 = por %p236, %p237
      %p239 = scmp.ne.s32.totalorder %s225, %s226
      %p240 = scmp.eq.s32.totalorder %s22, 1
      %p241 = por %p239, %p240
      %p243 = scmp.ne.s32.totalorder %s226, %s242
      %p244 = scmp.eq.s32.totalorder %s22, 0
      %p245 = por %p243, %p244
      %p246 = scmp.le.s32.totalorder 1, %s16
      %p247 = scmp.lt.s32.totalorder %s16, 3
      %p248 = pnand %p246, %p247
      %p249 = pneg %p248
      // Predicated region
      $region9: #{_lambda_.1} parent=5 // pred_check
        _
      $region10: #{_lambda_.1} parent=5 // pred_check_branch
        %251 = sbr.rel (%p248) target = $region12
      $region11: #{_lambda_.1} parent=5 // pred_region
        %s252 = ssub.s32 %s16, 1
        // Predicated region
        $region13: #{_lambda_.1} parent=11 // pred_check
          %p253 = pneg %p105
        $region14: #{_lambda_.1} parent=11 // pred_check_branch
          %255 = sbr.rel (%p253) target = $region16
        $region15: #{_lambda_.1} parent=11 // pred_region
          _
        $region16: #{_lambda_.1} parent=11 // pred_fallthru
          _
        // Predicated region
        $region17: #{_lambda_.1} parent=11 // pred_check
          %p256 = pneg %p126
        $region18: #{_lambda_.1} parent=11 // pred_check_branch
          %258 = sbr.rel (%p256) target = $region20
        $region19: #{_lambda_.1} parent=11 // pred_region
          %s260 = ssub.s32 3072, 3072
          %261 = vsyncadd [#allocation6], %s260
          %s262 = sshll.u32 [#allocation5], 4
          %s263 = int_to_ptr.vmem [resolvable:$true] %s262
          %268 = dma.hbm_to_vmem [thread:$0]  %s3, 3072, %s263, [#allocation6], 128, 128, 8
        $region20: #{_lambda_.1} parent=11 // pred_fallthru
          _
        // Predicated region
        $region21: #{_lambda_.1} parent=11 // pred_check
          %p269 = pneg %p147
        $region22: #{_lambda_.1} parent=11 // pred_check_branch
          %271 = sbr.rel (%p269) target = $region24
        $region23: #{_lambda_.1} parent=11 // pred_region
          %s273 = ssub.s32 6144, 6144
          %274 = vsyncadd [#allocation8], %s273
          %s275 = sshll.u32 [#allocation7], 4
          %s276 = int_to_ptr.vmem [resolvable:$true] %s275
          %281 = dma.hbm_to_vmem [thread:$0]  %s4, 6144, %s276, [#allocation8], 128, 128, 8
        $region24: #{_lambda_.1} parent=11 // pred_fallthru
          _
        // Predicated region
        $region25: #{_lambda_.1} parent=11 // pred_check
          %p282 = pneg %p168
        $region26: #{_lambda_.1} parent=11 // pred_check_branch
          %284 = sbr.rel (%p282) target = $region28
        $region27: #{_lambda_.1} parent=11 // pred_region
          _
        $region28: #{_lambda_.1} parent=11 // pred_fallthru
          _
        // Predicated region
        $region29: #{_lambda_.1} parent=11 // pred_check
          %p285 = pneg %p189
        $region30: #{_lambda_.1} parent=11 // pred_check_branch
          %287 = sbr.rel (%p285) target = $region32
        $region31: #{_lambda_.1} parent=11 // pred_region
          _
        $region32: #{_lambda_.1} parent=11 // pred_fallthru
          _
        // Predicated region
        $region33: #{_lambda_.1} parent=11 // pred_check
          %p288 = pneg %p210
        $region34: #{_lambda_.1} parent=11 // pred_check_branch
          %290 = sbr.rel (%p288) target = $region36
        $region35: #{_lambda_.1} parent=11 // pred_region
          _
        $region36: #{_lambda_.1} parent=11 // pred_fallthru
          _
      $region12: #{_lambda_.1} parent=5 // pred_fallthru
        _
      %p291 = scmp.lt.s32.totalorder %s16, 2
      // Predicated region
      $region37: #{_lambda_.1} parent=5 // pred_check
        %p292 = pneg %p291
      $region38: #{_lambda_.1} parent=5 // pred_check_branch
        %294 = sbr.rel (%p292) target = $region40
      $region39: #{_lambda_.1} parent=5 // pred_region
        // Predicated region
        $region41: #{_lambda_.1} parent=39 // pred_check
          %p295 = pneg %p50
        $region42: #{_lambda_.1} parent=39 // pred_check_branch
          %297 = sbr.rel (%p295) target = $region44
        $region43: #{_lambda_.1} parent=39 // pred_region
          %p298 = scmp.lt.s32.totalorder %s23, 1
          %s299 = scalar_select %p298, %s23, 1
          %p300 = scmp.lt.s32.totalorder %s24, 0
          %s301 = scalar_select %p300, %s24, 0
          %s302 = sadd.s32 %s301, %s299
          %s303 = smul.addr %s302, 8
          %s304 = scalar_lea.vmem %s0, %s303
        $region44: #{_lambda_.1} parent=39 // pred_fallthru
          _
        // Predicated region
        $region45: #{_lambda_.1} parent=39 // pred_check
          %p305 = pneg %p78
        $region46: #{_lambda_.1} parent=39 // pred_check_branch
          %307 = sbr.rel (%p305) target = $region48
        $region47: #{_lambda_.1} parent=39 // pred_region
          %p308 = scmp.lt.s32.totalorder %s23, 1
          %s309 = scalar_select %p308, %s23, 1
          %p310 = scmp.lt.s32.totalorder %s24, 0
          %s311 = scalar_select %p310, %s24, 0
          %s312 = sadd.s32 %s311, %s309
          %s313 = smul.addr %s312, 4
          %s314 = scalar_lea.vmem %s1, %s313
        $region48: #{_lambda_.1} parent=39 // pred_fallthru
          _
      $region40: #{_lambda_.1} parent=5 // pred_fallthru
        _
      %p315 = scmp.le.s32.totalorder 1, %s16
      %p316 = scmp.lt.s32.totalorder %s16, 3
      %p317 = pnand %p315, %p316
      %p318 = pneg %p317
      // Predicated region
      $region49: #{_lambda_.1} parent=5 // pred_check
        _
      $region50: #{_lambda_.1} parent=5 // pred_check_branch
        %320 = sbr.rel (%p317) target = $region52
      $region51: #{_lambda_.1} parent=5 // pred_region
        %s321 = ssub.s32 %s16, 1
        // Predicated region
        $region53: #{_lambda_.1} parent=51 // pred_check
          %p322 = pneg %p126
        $region54: #{_lambda_.1} parent=51 // pred_check_branch
          %324 = sbr.rel (%p322) target = $region56
        $region55: #{_lambda_.1} parent=51 // pred_region
          %325 = dma.done [#allocation6], 3072
        $region56: #{_lambda_.1} parent=51 // pred_fallthru
          _
        // Predicated region
        $region57: #{_lambda_.1} parent=51 // pred_check
          %p326 = pneg %p147
        $region58: #{_lambda_.1} parent=51 // pred_check_branch
          %328 = sbr.rel (%p326) target = $region60
        $region59: #{_lambda_.1} parent=51 // pred_region
          %329 = dma.done [#allocation8], 6144
        $region60: #{_lambda_.1} parent=51 // pred_fallthru
          _
        %p330 = scmp.lt.s32.totalorder %s25, 1
        %s331 = scalar_select %p330, %s25, 1
        %p332 = scmp.lt.s32.totalorder %s26, 0
        %s333 = scalar_select %p332, %s26, 0
        %s334 = sadd.s32 %s333, %s331
        %s335 = smul.addr %s334, 8
        %s336 = scalar_lea.vmem %s0, %s335
        %p337 = pneg %p56
        %p338 = pneg %p53
        %p339 = scmp.lt.s32.totalorder %s25, 1
        %s340 = scalar_select %p339, %s25, 1
        %p341 = scmp.lt.s32.totalorder %s26, 0
        %s342 = scalar_select %p341, %s26, 0
        %s343 = sadd.s32 %s342, %s340
        %s344 = smul.addr %s343, 4
        %s345 = scalar_lea.vmem %s1, %s344
        %p346 = pneg %p84
        %p347 = pneg %p81
        %p348 = pneg %p105
        %p349 = pneg %p102
        %p350 = pneg %p126
        %p351 = pneg %p123
        %p352 = pneg %p147
        %p353 = pneg %p144
        %p354 = pneg %p168
        %p355 = pneg %p165
        %p356 = pneg %p189
        %p357 = pneg %p186
        %p358 = pneg %p210
        %p359 = pneg %p207
        %p360 = pneg %p238
        %p361 = pneg %p235
        %p362 = scmp.lt.s32.totalorder %s25, 1
        %s363 = scalar_select %p362, %s25, 1
        %p364 = scmp.lt.s32.totalorder %s26, 0
        %s365 = scalar_select %p364, %s26, 0
        %s366 = sadd.s32 %s365, %s363
        %s367 = smul.addr %s366, 8
        %s368 = scalar_lea.vmem %s8, %s367
        %p369 = scmp.lt.s32.totalorder %s25, 1
        %s370 = scalar_select %p369, %s25, 1
        %p371 = scmp.lt.s32.totalorder %s26, 0
        %s372 = scalar_select %p371, %s26, 0
        %s373 = sadd.s32 %s372, %s370
        %s374 = smul.addr %s373, 8
        %s375 = scalar_lea.vmem %s0, %s374
        %p376 = scmp.lt.s32.totalorder %s25, 1
        %s377 = scalar_select %p376, %s25, 1
        %p378 = scmp.lt.s32.totalorder %s26, 0
        %s379 = scalar_select %p378, %s26, 0
        %s380 = sadd.s32 %s379, %s377
        %s381 = smul.addr %s380, 4
        %s382 = scalar_lea.vmem %s1, %s381
        %p383 = scmp.lt.s32.totalorder %s25, 1
        %s384 = scalar_select %p383, %s25, 1
        %p385 = scmp.lt.s32.totalorder %s26, 0
        %s386 = scalar_select %p385, %s26, 0
        %s387 = sadd.s32 %s386, %s384
        %s388 = smul.addr %s387, 8
        %s389 = scalar_lea.vmem %s8, %s388
        %v390 = vld [vmem:[%s382] sm:$0x3]
        %vm391 = vcmask 254976
        %392 = vst.msk [vmem:[#allocation2] sm:$0x3] %vm391, %v390
        %v393 = vld [vmem:[%s375] sm:$0xff]
        %vm394 = vcmask 261120
        %395 = vst.msk [vmem:[#allocation2 + $0x2] sm:$0xff] %vm394, %v393
        %v396 = vld [vmem:[%s382 + $0x2] sm:$0x3]
        %397 = vst.msk [vmem:[#allocation2 + $0xa] sm:$0x3] %vm391, %v396
        %v398 = vld [vmem:[#allocation2 + $0x2] sm:$0xff]
        %v399 = vld [vmem:[#allocation2 + $0xa] sm:$0x3]
        %v400 = vld [vmem:[%s2] sm:$0xff]
        %v401 = vld [vmem:[%s2 + $0x8] sm:$0xff]
        %v402 = vld [vmem:[%s2 + $0x10] sm:$0xff]
        %v403 = vld [vmem:[%s2 + $0x18] sm:$0xff]
        %v404 = vld [vmem:[#allocation2 + $0x1] sm:$0xff]
        %v405 = vld [vmem:[#allocation2 + $0x9] sm:$0x3]
        %s406 = scalar_lea.vmem %s2, 32
        %v407 = vld [vmem:[%s406] sm:$0xff]
        %v408 = vld [vmem:[%s406 + $0x8] sm:$0xff]
        %v409 = vld [vmem:[%s406 + $0x10] sm:$0xff]
        %v410 = vld [vmem:[%s406 + $0x18] sm:$0xff]
        %v412 = vsel %vm394, %v404, 0
        %v415 = vsel %vm394, %v405, 0
        %417 = vmatprep.subr.mxu0 0.0
        %418 = vmatpush1.msra.mxu0 0.0
        %419 = vmatprep.subr.mxu0 0.0
        %420 = vmatpush1.msra.mxu0 0.0
        %421 = vmatprep.subr.mxu0 0.0
        %422 = vmatpush1.msra.mxu0 0.0
        %423 = vmatprep.subr.mxu0 0.0
        %424 = vmatpush1.msra.mxu0 0.0
        %425 = vmatprep.subr.mxu0 0.0
        %426 = vmatpush1.msra.mxu0 0.0
        %427 = vmatprep.subr.mxu0 0.0
        %428 = vmatpush1.msra.mxu0 0.0
        %429 = vmatprep.subr.mxu0 0.0
        %430 = vmatpush1.msra.mxu0 0.0
        %431 = vmatprep.subr.mxu0 0.0
        %432 = vmatpush1.msra.mxu0 0.0
        %433 = vmatprep.subr.mxu0 0.0
        %434 = vmatpush1.msra.mxu0 0.0
        %435 = vmatprep.subr.mxu0 0.0
        %436 = vmatpush1.msra.mxu0 0.0
        %437 = vmatprep.subr.mxu0 0.0
        %438 = vmatpush1.msra.mxu0 0.0
        %439 = vmatprep.subr.mxu0 0.0
        %440 = vmatpush1.msra.mxu0 0.0
        %441 = vmatprep.subr.mxu0 0.0
        %442 = vmatpush1.msra.mxu0 %v410
        %443 = vmatprep.subr.mxu0 0.0
        %444 = vmatpush1.msra.mxu0 %v409
        %445 = vmatprep.subr.mxu0 0.0
        %446 = vmatpush1.msra.mxu0 %v408
        %447 = vmatprep.subr.mxu0 0.0
        %448 = vmatpush1.msra.mxu0 %v407
        %449 = vmatprep.subr.mxu0 0.0
        %450 = vmatpush2.msra.mxu0 0.0
        %451 = vmatprep.subr.mxu0 0.0
        %452 = vmatpush2.msra.mxu0 0.0
        %453 = vmatprep.subr.mxu0 0.0
        %454 = vmatpush2.msra.mxu0 0.0
        %455 = vmatprep.subr.mxu0 0.0
        %456 = vmatpush2.msra.mxu0 0.0
        %457 = vmatprep.subr.mxu0 0.0
        %458 = vmatpush2.msra.mxu0 0.0
        %459 = vmatprep.subr.mxu0 0.0
        %460 = vmatpush2.msra.mxu0 0.0
        %461 = vmatprep.subr.mxu0 0.0
        %462 = vmatpush2.msra.mxu0 0.0
        %463 = vmatprep.subr.mxu0 0.0
        %464 = vmatpush2.msra.mxu0 0.0
        %465 = vmatprep.subr.mxu0 0.0
        %466 = vmatpush2.msra.mxu0 0.0
        %467 = vmatprep.subr.mxu0 0.0
        %468 = vmatpush2.msra.mxu0 0.0
        %469 = vmatprep.subr.mxu0 0.0
        %470 = vmatpush2.msra.mxu0 0.0
        %471 = vmatprep.subr.mxu0 0.0
        %472 = vmatpush2.msra.mxu0 0.0
        %473 = vmatprep.subr.mxu0 0.0
        %474 = vmatpush2.msra.mxu0 0.0
        %475 = vmatprep.subr.mxu0 0.0
        %476 = vmatpush2.msra.mxu0 0.0
        %477 = vmatprep.subr.mxu0 0.0
        %478 = vmatpush2.msra.mxu0 0.0
        %479 = vmatprep.subr.mxu0 0.0
        %480 = vmatpush2.msra.mxu0 0.0
        %481 = vmatprep.mubr.f32.mxu0 0.0
        %482 = vmatmul.mubr.f32.gmra.mxu0 %v412
        %v483 = vpop.f32.mrf.mxu0
        %v484 = vadd.f32 0.0, %v483
        %v485 = vpop.f32.mrf.mxu0
        %486 = vmatprep.mubr.f32.mxu0 0.0
        %487 = vmatmul.mubr.f32.gmra.mxu0 %v415
        %v488 = vpop.f32.mrf.mxu0
        %v489 = vadd.f32 0.0, %v488
        %v490 = vpop.f32.mrf.mxu0
        %491 = vdwg.mxu0
        %v493 = vsel %vm394, %v398, 0
        %v496 = vsel %vm394, %v399, 0
        %498 = vmatprep.subr.mxu0 0.0
        %499 = vmatpush1.msra.mxu0 0.0
        %500 = vmatprep.subr.mxu0 0.0
        %501 = vmatpush1.msra.mxu0 0.0
        %502 = vmatprep.subr.mxu0 0.0
        %503 = vmatpush1.msra.mxu0 0.0
        %504 = vmatprep.subr.mxu0 0.0
        %505 = vmatpush1.msra.mxu0 0.0
        %506 = vmatprep.subr.mxu0 0.0
        %507 = vmatpush1.msra.mxu0 0.0
        %508 = vmatprep.subr.mxu0 0.0
        %509 = vmatpush1.msra.mxu0 0.0
        %510 = vmatprep.subr.mxu0 0.0
        %511 = vmatpush1.msra.mxu0 0.0
        %512 = vmatprep.subr.mxu0 0.0
        %513 = vmatpush1.msra.mxu0 0.0
        %514 = vmatprep.subr.mxu0 0.0
        %515 = vmatpush1.msra.mxu0 0.0
        %516 = vmatprep.subr.mxu0 0.0
        %517 = vmatpush1.msra.mxu0 0.0
        %518 = vmatprep.subr.mxu0 0.0
        %519 = vmatpush1.msra.mxu0 0.0
        %520 = vmatprep.subr.mxu0 0.0
        %521 = vmatpush1.msra.mxu0 0.0
        %522 = vmatprep.subr.mxu0 0.0
        %523 = vmatpush1.msra.mxu0 %v403
        %524 = vmatprep.subr.mxu0 0.0
        %525 = vmatpush1.msra.mxu0 %v402
        %526 = vmatprep.subr.mxu0 0.0
        %527 = vmatpush1.msra.mxu0 %v401
        %528 = vmatprep.subr.mxu0 0.0
        %529 = vmatpush1.msra.mxu0 %v400
        %530 = vmatprep.subr.mxu0 0.0
        %531 = vmatpush2.msra.mxu0 0.0
        %532 = vmatprep.subr.mxu0 0.0
        %533 = vmatpush2.msra.mxu0 0.0
        %534 = vmatprep.subr.mxu0 0.0
        %535 = vmatpush2.msra.mxu0 0.0
        %536 = vmatprep.subr.mxu0 0.0
        %537 = vmatpush2.msra.mxu0 0.0
        %538 = vmatprep.subr.mxu0 0.0
        %539 = vmatpush2.msra.mxu0 0.0
        %540 = vmatprep.subr.mxu0 0.0
        %541 = vmatpush2.msra.mxu0 0.0
        %542 = vmatprep.subr.mxu0 0.0
        %543 = vmatpush2.msra.mxu0 0.0
        %544 = vmatprep.subr.mxu0 0.0
        %545 = vmatpush2.msra.mxu0 0.0
        %546 = vmatprep.subr.mxu0 0.0
        %547 = vmatpush2.msra.mxu0 0.0
        %548 = vmatprep.subr.mxu0 0.0
        %549 = vmatpush2.msra.mxu0 0.0
        %550 = vmatprep.subr.mxu0 0.0
        %551 = vmatpush2.msra.mxu0 0.0
        %552 = vmatprep.subr.mxu0 0.0
        %553 = vmatpush2.msra.mxu0 0.0
        %554 = vmatprep.subr.mxu0 0.0
        %555 = vmatpush2.msra.mxu0 0.0
        %556 = vmatprep.subr.mxu0 0.0
        %557 = vmatpush2.msra.mxu0 0.0
        %558 = vmatprep.subr.mxu0 0.0
        %559 = vmatpush2.msra.mxu0 0.0
        %560 = vmatprep.subr.mxu0 0.0
        %561 = vmatpush2.msra.mxu0 0.0
        %562 = vmatprep.mubr.f32.mxu0 0.0
        %563 = vmatmul.mubr.f32.gmra.mxu0 %v493
        %v564 = vpop.f32.mrf.mxu0
        %v565 = vadd.f32 %v484, %v564
        %v566 = vpop.f32.mrf.mxu0
        %567 = vmatprep.mubr.f32.mxu0 0.0
        %568 = vmatmul.mubr.f32.gmra.mxu0 %v496
        %v569 = vpop.f32.mrf.mxu0
        %v570 = vadd.f32 %v489, %v569
        %v571 = vpop.f32.mrf.mxu0
        %572 = vdwg.mxu0
        %v573 = vld [vmem:[#allocation2] sm:$0xff]
        %v574 = vld [vmem:[#allocation2 + $0x8] sm:$0x3]
        %s575 = scalar_lea.vmem %s2, 64
        %v576 = vld [vmem:[%s575] sm:$0xff]
        %v577 = vld [vmem:[%s575 + $0x8] sm:$0xff]
        %v578 = vld [vmem:[%s575 + $0x10] sm:$0xff]
        %v579 = vld [vmem:[%s575 + $0x18] sm:$0xff]
        %v581 = vsel %vm394, %v573, 0
        %v584 = vsel %vm394, %v574, 0
        %586 = vmatprep.subr.mxu0 0.0
        %587 = vmatpush1.msra.mxu0 0.0
        %588 = vmatprep.subr.mxu0 0.0
        %589 = vmatpush1.msra.mxu0 0.0
        %590 = vmatprep.subr.mxu0 0.0
        %591 = vmatpush1.msra.mxu0 0.0
        %592 = vmatprep.subr.mxu0 0.0
        %593 = vmatpush1.msra.mxu0 0.0
        %594 = vmatprep.subr.mxu0 0.0
        %595 = vmatpush1.msra.mxu0 0.0
        %596 = vmatprep.subr.mxu0 0.0
        %597 = vmatpush1.msra.mxu0 0.0
        %598 = vmatprep.subr.mxu0 0.0
        %599 = vmatpush1.msra.mxu0 0.0
        %600 = vmatprep.subr.mxu0 0.0
        %601 = vmatpush1.msra.mxu0 0.0
        %602 = vmatprep.subr.mxu0 0.0
        %603 = vmatpush1.msra.mxu0 0.0
        %604 = vmatprep.subr.mxu0 0.0
        %605 = vmatpush1.msra.mxu0 0.0
        %606 = vmatprep.subr.mxu0 0.0
        %607 = vmatpush1.msra.mxu0 0.0
        %608 = vmatprep.subr.mxu0 0.0
        %609 = vmatpush1.msra.mxu0 0.0
        %610 = vmatprep.subr.mxu0 0.0
        %611 = vmatpush1.msra.mxu0 %v579
        %612 = vmatprep.subr.mxu0 0.0
        %613 = vmatpush1.msra.mxu0 %v578
        %614 = vmatprep.subr.mxu0 0.0
        %615 = vmatpush1.msra.mxu0 %v577
        %616 = vmatprep.subr.mxu0 0.0
        %617 = vmatpush1.msra.mxu0 %v576
        %618 = vmatprep.subr.mxu0 0.0
        %619 = vmatpush2.msra.mxu0 0.0
        %620 = vmatprep.subr.mxu0 0.0
        %621 = vmatpush2.msra.mxu0 0.0
        %622 = vmatprep.subr.mxu0 0.0
        %623 = vmatpush2.msra.mxu0 0.0
        %624 = vmatprep.subr.mxu0 0.0
        %625 = vmatpush2.msra.mxu0 0.0
        %626 = vmatprep.subr.mxu0 0.0
        %627 = vmatpush2.msra.mxu0 0.0
        %628 = vmatprep.subr.mxu0 0.0
        %629 = vmatpush2.msra.mxu0 0.0
        %630 = vmatprep.subr.mxu0 0.0
        %631 = vmatpush2.msra.mxu0 0.0
        %632 = vmatprep.subr.mxu0 0.0
        %633 = vmatpush2.msra.mxu0 0.0
        %634 = vmatprep.subr.mxu0 0.0
        %635 = vmatpush2.msra.mxu0 0.0
        %636 = vmatprep.subr.mxu0 0.0
        %637 = vmatpush2.msra.mxu0 0.0
        %638 = vmatprep.subr.mxu0 0.0
        %639 = vmatpush2.msra.mxu0 0.0
        %640 = vmatprep.subr.mxu0 0.0
        %641 = vmatpush2.msra.mxu0 0.0
        %642 = vmatprep.subr.mxu0 0.0
        %643 = vmatpush2.msra.mxu0 0.0
        %644 = vmatprep.subr.mxu0 0.0
        %645 = vmatpush2.msra.mxu0 0.0
        %646 = vmatprep.subr.mxu0 0.0
        %647 = vmatpush2.msra.mxu0 0.0
        %648 = vmatprep.subr.mxu0 0.0
        %649 = vmatpush2.msra.mxu0 0.0
        %650 = vmatprep.mubr.f32.mxu0 0.0
        %651 = vmatmul.mubr.f32.gmra.mxu0 %v581
        %v652 = vpop.f32.mrf.mxu0
        %v653 = vadd.f32 0.0, %v652
        %v654 = vpop.f32.mrf.mxu0
        %655 = vmatprep.mubr.f32.mxu0 0.0
        %656 = vmatmul.mubr.f32.gmra.mxu0 %v584
        %v657 = vpop.f32.mrf.mxu0
        %v658 = vadd.f32 0.0, %v657
        %v659 = vpop.f32.mrf.mxu0
        %660 = vdwg.mxu0
        %v661 = vadd.f32 %v565, %v653
        %v662 = vadd.f32 %v570, %v658
        %v663 = vld [vmem:[%s5] sm:$0x1]
        %v665 = vlaneseq
        %v666 = vshrl.u32 %v665, 7
        %v667 = vsub.s32 0, %v666
        %v668 = vrot.slane %v663, %v667
        %v670 = vadd.f32 %v661, %v668
        %v671 = vadd.f32 %v662, %v668
        %v672 = vmax.f32 %v670, 0.0
        %v673 = vmax.f32 %v671, 0.0
        %vm674 = vcmask 516096
        %675 = vst.msk [vmem:[#allocation3] sm:$0x1] %vm674, 0.0
        %vm676 = vcmask 523264
        %677 = vst.msk [vmem:[#allocation3 + $0x1] sm:$0xff] %vm676, %v672
        %vm678 = vcmask 517120
        %679 = vst.msk [vmem:[#allocation3 + $0x9] sm:$0x3] %vm678, %v673
        %680 = vst.msk [vmem:[#allocation3 + $0xb] sm:$0x1] %vm674, 0.0
        %p681 = scmp.eq.s32.totalorder %s26, 0
        // Predicated region
        $region61: #{_lambda_.1} parent=51 // pred_check
          %p682 = pneg %p681
        $region62: #{_lambda_.1} parent=51 // pred_check_branch
          %684 = sbr.rel (%p682) target = $region64
        $region63: #{_lambda_.1} parent=51 // pred_region
          %685 = vst.msk [vmem:[#allocation3 + $0x1] sm:$0x1] %vm674, 0.0
          %686 = vst.msk [vmem:[#allocation3 + $0xa] sm:$0x1] %vm674, 0.0
        $region64: #{_lambda_.1} parent=51 // pred_fallthru
          _
        %v687 = vld [vmem:[#allocation3] sm:$0xff]
        %v688 = vld [vmem:[#allocation3 + $0x8] sm:$0x3]
        %v689 = vld [vmem:[#allocation5] sm:$0xff]
        %v690 = vld [vmem:[#allocation5 + $0x8] sm:$0xff]
        %v691 = vld [vmem:[#allocation5 + $0x10] sm:$0xff]
        %v692 = vld [vmem:[#allocation5 + $0x18] sm:$0xff]
        %v693 = vld [vmem:[#allocation5 + $0x20] sm:$0xff]
        %v694 = vld [vmem:[#allocation5 + $0x28] sm:$0xff]
        %v695 = vld [vmem:[#allocation5 + $0x30] sm:$0xff]
        %v696 = vld [vmem:[#allocation5 + $0x38] sm:$0xff]
        %v697 = vld [vmem:[#allocation3 + $0x1] sm:$0xff]
        %v698 = vld [vmem:[#allocation3 + $0x9] sm:$0x3]
        %s699 = scalar_lea.vmem [#allocation5], 64
        %v700 = vld [vmem:[%s699] sm:$0xff]
        %v701 = vld [vmem:[%s699 + $0x8] sm:$0xff]
        %v702 = vld [vmem:[%s699 + $0x10] sm:$0xff]
        %v703 = vld [vmem:[%s699 + $0x18] sm:$0xff]
        %v704 = vld [vmem:[%s699 + $0x20] sm:$0xff]
        %v705 = vld [vmem:[%s699 + $0x28] sm:$0xff]
        %v706 = vld [vmem:[%s699 + $0x30] sm:$0xff]
        %v707 = vld [vmem:[%s699 + $0x38] sm:$0xff]
        %v709 = vsel %vm676, %v697, 0
        %v712 = vsel %vm676, %v698, 0
        %714 = vmatprep.subr.mxu0 0.0
        %715 = vmatpush1.msra.mxu0 0.0
        %716 = vmatprep.subr.mxu0 0.0
        %717 = vmatpush1.msra.mxu0 0.0
        %718 = vmatprep.subr.mxu0 0.0
        %719 = vmatpush1.msra.mxu0 0.0
        %720 = vmatprep.subr.mxu0 0.0
        %721 = vmatpush1.msra.mxu0 0.0
        %722 = vmatprep.subr.mxu0 0.0
        %723 = vmatpush1.msra.mxu0 0.0
        %724 = vmatprep.subr.mxu0 0.0
        %725 = vmatpush1.msra.mxu0 0.0
        %726 = vmatprep.subr.mxu0 0.0
        %727 = vmatpush1.msra.mxu0 0.0
        %728 = vmatprep.subr.mxu0 0.0
        %729 = vmatpush1.msra.mxu0 0.0
        %730 = vmatprep.subr.mxu0 0.0
        %731 = vmatpush1.msra.mxu0 %v707
        %732 = vmatprep.subr.mxu0 0.0
        %733 = vmatpush1.msra.mxu0 %v706
        %734 = vmatprep.subr.mxu0 0.0
        %735 = vmatpush1.msra.mxu0 %v705
        %736 = vmatprep.subr.mxu0 0.0
        %737 = vmatpush1.msra.mxu0 %v704
        %738 = vmatprep.subr.mxu0 0.0
        %739 = vmatpush1.msra.mxu0 %v703
        %740 = vmatprep.subr.mxu0 0.0
        %741 = vmatpush1.msra.mxu0 %v702
        %742 = vmatprep.subr.mxu0 0.0
        %743 = vmatpush1.msra.mxu0 %v701
        %744 = vmatprep.subr.mxu0 0.0
        %745 = vmatpush1.msra.mxu0 %v700
        %746 = vmatprep.subr.mxu0 0.0
        %747 = vmatpush2.msra.mxu0 0.0
        %748 = vmatprep.subr.mxu0 0.0
        %749 = vmatpush2.msra.mxu0 0.0
        %750 = vmatprep.subr.mxu0 0.0
        %751 = vmatpush2.msra.mxu0 0.0
        %752 = vmatprep.subr.mxu0 0.0
        %753 = vmatpush2.msra.mxu0 0.0
        %754 = vmatprep.subr.mxu0 0.0
        %755 = vmatpush2.msra.mxu0 0.0
        %756 = vmatprep.subr.mxu0 0.0
        %757 = vmatpush2.msra.mxu0 0.0
        %758 = vmatprep.subr.mxu0 0.0
        %759 = vmatpush2.msra.mxu0 0.0
        %760 = vmatprep.subr.mxu0 0.0
        %761 = vmatpush2.msra.mxu0 0.0
        %762 = vmatprep.subr.mxu0 0.0
        %763 = vmatpush2.msra.mxu0 0.0
        %764 = vmatprep.subr.mxu0 0.0
        %765 = vmatpush2.msra.mxu0 0.0
        %766 = vmatprep.subr.mxu0 0.0
        %767 = vmatpush2.msra.mxu0 0.0
        %768 = vmatprep.subr.mxu0 0.0
        %769 = vmatpush2.msra.mxu0 0.0
        %770 = vmatprep.subr.mxu0 0.0
        %771 = vmatpush2.msra.mxu0 0.0
        %772 = vmatprep.subr.mxu0 0.0
        %773 = vmatpush2.msra.mxu0 0.0
        %774 = vmatprep.subr.mxu0 0.0
        %775 = vmatpush2.msra.mxu0 0.0
        %776 = vmatprep.subr.mxu0 0.0
        %777 = vmatpush2.msra.mxu0 0.0
        %778 = vmatprep.mubr.f32.mxu0 0.0
        %779 = vmatmul.mubr.f32.gmra.mxu0 %v709
        %v780 = vpop.f32.mrf.mxu0
        %v781 = vadd.f32 0.0, %v780
        %v782 = vpop.f32.mrf.mxu0
        %783 = vmatprep.mubr.f32.mxu0 0.0
        %784 = vmatmul.mubr.f32.gmra.mxu0 %v712
        %v785 = vpop.f32.mrf.mxu0
        %v786 = vadd.f32 0.0, %v785
        %v787 = vpop.f32.mrf.mxu0
        %788 = vdwg.mxu0
        %v790 = vsel %vm676, %v687, 0
        %v793 = vsel %vm676, %v688, 0
        %795 = vmatprep.subr.mxu0 0.0
        %796 = vmatpush1.msra.mxu0 0.0
        %797 = vmatprep.subr.mxu0 0.0
        %798 = vmatpush1.msra.mxu0 0.0
        %799 = vmatprep.subr.mxu0 0.0
        %800 = vmatpush1.msra.mxu0 0.0
        %801 = vmatprep.subr.mxu0 0.0
        %802 = vmatpush1.msra.mxu0 0.0
        %803 = vmatprep.subr.mxu0 0.0
        %804 = vmatpush1.msra.mxu0 0.0
        %805 = vmatprep.subr.mxu0 0.0
        %806 = vmatpush1.msra.mxu0 0.0
        %807 = vmatprep.subr.mxu0 0.0
        %808 = vmatpush1.msra.mxu0 0.0
        %809 = vmatprep.subr.mxu0 0.0
        %810 = vmatpush1.msra.mxu0 0.0
        %811 = vmatprep.subr.mxu0 0.0
        %812 = vmatpush1.msra.mxu0 %v696
        %813 = vmatprep.subr.mxu0 0.0
        %814 = vmatpush1.msra.mxu0 %v695
        %815 = vmatprep.subr.mxu0 0.0
        %816 = vmatpush1.msra.mxu0 %v694
        %817 = vmatprep.subr.mxu0 0.0
        %818 = vmatpush1.msra.mxu0 %v693
        %819 = vmatprep.subr.mxu0 0.0
        %820 = vmatpush1.msra.mxu0 %v692
        %821 = vmatprep.subr.mxu0 0.0
        %822 = vmatpush1.msra.mxu0 %v691
        %823 = vmatprep.subr.mxu0 0.0
        %824 = vmatpush1.msra.mxu0 %v690
        %825 = vmatprep.subr.mxu0 0.0
        %826 = vmatpush1.msra.mxu0 %v689
        %827 = vmatprep.subr.mxu0 0.0
        %828 = vmatpush2.msra.mxu0 0.0
        %829 = vmatprep.subr.mxu0 0.0
        %830 = vmatpush2.msra.mxu0 0.0
        %831 = vmatprep.subr.mxu0 0.0
        %832 = vmatpush2.msra.mxu0 0.0
        %833 = vmatprep.subr.mxu0 0.0
        %834 = vmatpush2.msra.mxu0 0.0
        %835 = vmatprep.subr.mxu0 0.0
        %836 = vmatpush2.msra.mxu0 0.0
        %837 = vmatprep.subr.mxu0 0.0
        %838 = vmatpush2.msra.mxu0 0.0
        %839 = vmatprep.subr.mxu0 0.0
        %840 = vmatpush2.msra.mxu0 0.0
        %841 = vmatprep.subr.mxu0 0.0
        %842 = vmatpush2.msra.mxu0 0.0
        %843 = vmatprep.subr.mxu0 0.0
        %844 = vmatpush2.msra.mxu0 0.0
        %845 = vmatprep.subr.mxu0 0.0
        %846 = vmatpush2.msra.mxu0 0.0
        %847 = vmatprep.subr.mxu0 0.0
        %848 = vmatpush2.msra.mxu0 0.0
        %849 = vmatprep.subr.mxu0 0.0
        %850 = vmatpush2.msra.mxu0 0.0
        %851 = vmatprep.subr.mxu0 0.0
        %852 = vmatpush2.msra.mxu0 0.0
        %853 = vmatprep.subr.mxu0 0.0
        %854 = vmatpush2.msra.mxu0 0.0
        %855 = vmatprep.subr.mxu0 0.0
        %856 = vmatpush2.msra.mxu0 0.0
        %857 = vmatprep.subr.mxu0 0.0
        %858 = vmatpush2.msra.mxu0 0.0
        %859 = vmatprep.mubr.f32.mxu0 0.0
        %860 = vmatmul.mubr.f32.gmra.mxu0 %v790
        %v861 = vpop.f32.mrf.mxu0
        %v862 = vadd.f32 %v781, %v861
        %v863 = vpop.f32.mrf.mxu0
        %864 = vmatprep.mubr.f32.mxu0 0.0
        %865 = vmatmul.mubr.f32.gmra.mxu0 %v793
        %v866 = vpop.f32.mrf.mxu0
        %v867 = vadd.f32 %v786, %v866
        %v868 = vpop.f32.mrf.mxu0
        %869 = vdwg.mxu0
        %v870 = vld [vmem:[#allocation3 + $0x2] sm:$0xff]
        %v871 = vld [vmem:[#allocation3 + $0xa] sm:$0x3]
        %s872 = scalar_lea.vmem [#allocation5], 128
        %v873 = vld [vmem:[%s872] sm:$0xff]
        %v874 = vld [vmem:[%s872 + $0x8] sm:$0xff]
        %v875 = vld [vmem:[%s872 + $0x10] sm:$0xff]
        %v876 = vld [vmem:[%s872 + $0x18] sm:$0xff]
        %v877 = vld [vmem:[%s872 + $0x20] sm:$0xff]
        %v878 = vld [vmem:[%s872 + $0x28] sm:$0xff]
        %v879 = vld [vmem:[%s872 + $0x30] sm:$0xff]
        %v880 = vld [vmem:[%s872 + $0x38] sm:$0xff]
        %v882 = vsel %vm676, %v870, 0
        %v885 = vsel %vm676, %v871, 0
        %887 = vmatprep.subr.mxu0 0.0
        %888 = vmatpush1.msra.mxu0 0.0
        %889 = vmatprep.subr.mxu0 0.0
        %890 = vmatpush1.msra.mxu0 0.0
        %891 = vmatprep.subr.mxu0 0.0
        %892 = vmatpush1.msra.mxu0 0.0
        %893 = vmatprep.subr.mxu0 0.0
        %894 = vmatpush1.msra.mxu0 0.0
        %895 = vmatprep.subr.mxu0 0.0
        %896 = vmatpush1.msra.mxu0 0.0
        %897 = vmatprep.subr.mxu0 0.0
        %898 = vmatpush1.msra.mxu0 0.0
        %899 = vmatprep.subr.mxu0 0.0
        %900 = vmatpush1.msra.mxu0 0.0
        %901 = vmatprep.subr.mxu0 0.0
        %902 = vmatpush1.msra.mxu0 0.0
        %903 = vmatprep.subr.mxu0 0.0
        %904 = vmatpush1.msra.mxu0 %v880
        %905 = vmatprep.subr.mxu0 0.0
        %906 = vmatpush1.msra.mxu0 %v879
        %907 = vmatprep.subr.mxu0 0.0
        %908 = vmatpush1.msra.mxu0 %v878
        %909 = vmatprep.subr.mxu0 0.0
        %910 = vmatpush1.msra.mxu0 %v877
        %911 = vmatprep.subr.mxu0 0.0
        %912 = vmatpush1.msra.mxu0 %v876
        %913 = vmatprep.subr.mxu0 0.0
        %914 = vmatpush1.msra.mxu0 %v875
        %915 = vmatprep.subr.mxu0 0.0
        %916 = vmatpush1.msra.mxu0 %v874
        %917 = vmatprep.subr.mxu0 0.0
        %918 = vmatpush1.msra.mxu0 %v873
        %919 = vmatprep.subr.mxu0 0.0
        %920 = vmatpush2.msra.mxu0 0.0
        %921 = vmatprep.subr.mxu0 0.0
        %922 = vmatpush2.msra.mxu0 0.0
        %923 = vmatprep.subr.mxu0 0.0
        %924 = vmatpush2.msra.mxu0 0.0
        %925 = vmatprep.subr.mxu0 0.0
        %926 = vmatpush2.msra.mxu0 0.0
        %927 = vmatprep.subr.mxu0 0.0
        %928 = vmatpush2.msra.mxu0 0.0
        %929 = vmatprep.subr.mxu0 0.0
        %930 = vmatpush2.msra.mxu0 0.0
        %931 = vmatprep.subr.mxu0 0.0
        %932 = vmatpush2.msra.mxu0 0.0
        %933 = vmatprep.subr.mxu0 0.0
        %934 = vmatpush2.msra.mxu0 0.0
        %935 = vmatprep.subr.mxu0 0.0
        %936 = vmatpush2.msra.mxu0 0.0
        %937 = vmatprep.subr.mxu0 0.0
        %938 = vmatpush2.msra.mxu0 0.0
        %939 = vmatprep.subr.mxu0 0.0
        %940 = vmatpush2.msra.mxu0 0.0
        %941 = vmatprep.subr.mxu0 0.0
        %942 = vmatpush2.msra.mxu0 0.0
        %943 = vmatprep.subr.mxu0 0.0
        %944 = vmatpush2.msra.mxu0 0.0
        %945 = vmatprep.subr.mxu0 0.0
        %946 = vmatpush2.msra.mxu0 0.0
        %947 = vmatprep.subr.mxu0 0.0
        %948 = vmatpush2.msra.mxu0 0.0
        %949 = vmatprep.subr.mxu0 0.0
        %950 = vmatpush2.msra.mxu0 0.0
        %951 = vmatprep.mubr.f32.mxu0 0.0
        %952 = vmatmul.mubr.f32.gmra.mxu0 %v882
        %v953 = vpop.f32.mrf.mxu0
        %v954 = vadd.f32 0.0, %v953
        %v955 = vpop.f32.mrf.mxu0
        %956 = vmatprep.mubr.f32.mxu0 0.0
        %957 = vmatmul.mubr.f32.gmra.mxu0 %v885
        %v958 = vpop.f32.mrf.mxu0
        %v959 = vadd.f32 0.0, %v958
        %v960 = vpop.f32.mrf.mxu0
        %961 = vdwg.mxu0
        %v962 = vadd.f32 %v862, %v954
        %v963 = vadd.f32 %v867, %v959
        %v964 = vld [vmem:[%s6] sm:$0x1]
        %v966 = vlaneseq
        %v967 = vshrl.u32 %v966, 7
        %v968 = vsub.s32 0, %v967
        %v969 = vrot.slane %v964, %v968
        %v971 = vadd.f32 %v962, %v969
        %v972 = vadd.f32 %v963, %v969
        %v973 = vmax.f32 %v971, 0.0
        %v974 = vmax.f32 %v972, 0.0
        %975 = vst [vmem:[#allocation4] sm:$0xff] %v973
        %976 = vst [vmem:[#allocation4 + $0x8] sm:$0x3] %v974
        // Predicated region
        $region65: #{_lambda_.1} parent=51 // pred_check
          %p977 = pneg %p681
        $region66: #{_lambda_.1} parent=51 // pred_check_branch
          %979 = sbr.rel (%p977) target = $region68
        $region67: #{_lambda_.1} parent=51 // pred_region
          %980 = vst [vmem:[#allocation4] sm:$0x1] 0.0
          %981 = vst [vmem:[#allocation4 + $0x9] sm:$0x1] 0.0
        $region68: #{_lambda_.1} parent=51 // pred_fallthru
          _
        %v982 = vld [vmem:[#allocation4] sm:$0xff]
        %v983 = vld [vmem:[#allocation7] sm:$0xff]
        %v984 = vld [vmem:[#allocation7 + $0x8] sm:$0xff]
        %v985 = vld [vmem:[#allocation7 + $0x10] sm:$0xff]
        %v986 = vld [vmem:[#allocation7 + $0x18] sm:$0xff]
        %v987 = vld [vmem:[#allocation7 + $0x20] sm:$0xff]
        %v988 = vld [vmem:[#allocation7 + $0x28] sm:$0xff]
        %v989 = vld [vmem:[#allocation7 + $0x30] sm:$0xff]
        %v990 = vld [vmem:[#allocation7 + $0x38] sm:$0xff]
        %v991 = vld [vmem:[#allocation7 + $0x40] sm:$0xff]
        %v992 = vld [vmem:[#allocation7 + $0x48] sm:$0xff]
        %v993 = vld [vmem:[#allocation7 + $0x50] sm:$0xff]
        %v994 = vld [vmem:[#allocation7 + $0x58] sm:$0xff]
        %v995 = vld [vmem:[#allocation7 + $0x60] sm:$0xff]
        %v996 = vld [vmem:[#allocation7 + $0x68] sm:$0xff]
        %v997 = vld [vmem:[#allocation7 + $0x70] sm:$0xff]
        %v998 = vld [vmem:[#allocation7 + $0x78] sm:$0xff]
        %v999 = vld [vmem:[#allocation4 + $0x1] sm:$0xff]
        %s1000 = scalar_lea.vmem [#allocation7], 128
        %v1001 = vld [vmem:[%s1000] sm:$0xff]
        %v1002 = vld [vmem:[%s1000 + $0x8] sm:$0xff]
        %v1003 = vld [vmem:[%s1000 + $0x10] sm:$0xff]
        %v1004 = vld [vmem:[%s1000 + $0x18] sm:$0xff]
        %v1005 = vld [vmem:[%s1000 + $0x20] sm:$0xff]
        %v1006 = vld [vmem:[%s1000 + $0x28] sm:$0xff]
        %v1007 = vld [vmem:[%s1000 + $0x30] sm:$0xff]
        %v1008 = vld [vmem:[%s1000 + $0x38] sm:$0xff]
        %v1009 = vld [vmem:[%s1000 + $0x40] sm:$0xff]
        %v1010 = vld [vmem:[%s1000 + $0x48] sm:$0xff]
        %v1011 = vld [vmem:[%s1000 + $0x50] sm:$0xff]
        %v1012 = vld [vmem:[%s1000 + $0x58] sm:$0xff]
        %v1013 = vld [vmem:[%s1000 + $0x60] sm:$0xff]
        %v1014 = vld [vmem:[%s1000 + $0x68] sm:$0xff]
        %v1015 = vld [vmem:[%s1000 + $0x70] sm:$0xff]
        %v1016 = vld [vmem:[%s1000 + $0x78] sm:$0xff]
        %1017 = vmatprep.subr.mxu0 0.0
        %1018 = vmatpush1.msra.mxu0 %v1016
        %1019 = vmatprep.subr.mxu0 0.0
        %1020 = vmatpush1.msra.mxu0 %v1015
        %1021 = vmatprep.subr.mxu0 0.0
        %1022 = vmatpush1.msra.mxu0 %v1014
        %1023 = vmatprep.subr.mxu0 0.0
        %1024 = vmatpush1.msra.mxu0 %v1013
        %1025 = vmatprep.subr.mxu0 0.0
        %1026 = vmatpush1.msra.mxu0 %v1012
        %1027 = vmatprep.subr.mxu0 0.0
        %1028 = vmatpush1.msra.mxu0 %v1011
        %1029 = vmatprep.subr.mxu0 0.0
        %1030 = vmatpush1.msra.mxu0 %v1010
        %1031 = vmatprep.subr.mxu0 0.0
        %1032 = vmatpush1.msra.mxu0 %v1009
        %1033 = vmatprep.subr.mxu0 0.0
        %1034 = vmatpush1.msra.mxu0 %v1008
        %1035 = vmatprep.subr.mxu0 0.0
        %1036 = vmatpush1.msra.mxu0 %v1007
        %1037 = vmatprep.subr.mxu0 0.0
        %1038 = vmatpush1.msra.mxu0 %v1006
        %1039 = vmatprep.subr.mxu0 0.0
        %1040 = vmatpush1.msra.mxu0 %v1005
        %1041 = vmatprep.subr.mxu0 0.0
        %1042 = vmatpush1.msra.mxu0 %v1004
        %1043 = vmatprep.subr.mxu0 0.0
        %1044 = vmatpush1.msra.mxu0 %v1003
        %1045 = vmatprep.subr.mxu0 0.0
        %1046 = vmatpush1.msra.mxu0 %v1002
        %1047 = vmatprep.subr.mxu0 0.0
        %1048 = vmatpush1.msra.mxu0 %v1001
        %1049 = vmatprep.subr.mxu0 0.0
        %1050 = vmatpush2.msra.mxu0 0.0
        %1051 = vmatprep.subr.mxu0 0.0
        %1052 = vmatpush2.msra.mxu0 0.0
        %1053 = vmatprep.subr.mxu0 0.0
        %1054 = vmatpush2.msra.mxu0 0.0
        %1055 = vmatprep.subr.mxu0 0.0
        %1056 = vmatpush2.msra.mxu0 0.0
        %1057 = vmatprep.subr.mxu0 0.0
        %1058 = vmatpush2.msra.mxu0 0.0
        %1059 = vmatprep.subr.mxu0 0.0
        %1060 = vmatpush2.msra.mxu0 0.0
        %1061 = vmatprep.subr.mxu0 0.0
        %1062 = vmatpush2.msra.mxu0 0.0
        %1063 = vmatprep.subr.mxu0 0.0
        %1064 = vmatpush2.msra.mxu0 0.0
        %1065 = vmatprep.subr.mxu0 0.0
        %1066 = vmatpush2.msra.mxu0 0.0
        %1067 = vmatprep.subr.mxu0 0.0
        %1068 = vmatpush2.msra.mxu0 0.0
        %1069 = vmatprep.subr.mxu0 0.0
        %1070 = vmatpush2.msra.mxu0 0.0
        %1071 = vmatprep.subr.mxu0 0.0
        %1072 = vmatpush2.msra.mxu0 0.0
        %1073 = vmatprep.subr.mxu0 0.0
        %1074 = vmatpush2.msra.mxu0 0.0
        %1075 = vmatprep.subr.mxu0 0.0
        %1076 = vmatpush2.msra.mxu0 0.0
        %1077 = vmatprep.subr.mxu0 0.0
        %1078 = vmatpush2.msra.mxu0 0.0
        %1079 = vmatprep.subr.mxu0 0.0
        %1080 = vmatpush2.msra.mxu0 0.0
        %1081 = vmatprep.mubr.f32.mxu0 0.0
        %1082 = vmatmul.mubr.f32.gmra.mxu0 %v999
        %v1083 = vpop.f32.mrf.mxu0
        %v1084 = vadd.f32 0.0, %v1083
        %v1085 = vpop.f32.mrf.mxu0
        %1086 = vdwg.mxu0
        %1087 = vmatprep.subr.mxu0 0.0
        %1088 = vmatpush1.msra.mxu0 %v998
        %1089 = vmatprep.subr.mxu0 0.0
        %1090 = vmatpush1.msra.mxu0 %v997
        %1091 = vmatprep.subr.mxu0 0.0
        %1092 = vmatpush1.msra.mxu0 %v996
        %1093 = vmatprep.subr.mxu0 0.0
        %1094 = vmatpush1.msra.mxu0 %v995
        %1095 = vmatprep.subr.mxu0 0.0
        %1096 = vmatpush1.msra.mxu0 %v994
        %1097 = vmatprep.subr.mxu0 0.0
        %1098 = vmatpush1.msra.mxu0 %v993
        %1099 = vmatprep.subr.mxu0 0.0
        %1100 = vmatpush1.msra.mxu0 %v992
        %1101 = vmatprep.subr.mxu0 0.0
        %1102 = vmatpush1.msra.mxu0 %v991
        %1103 = vmatprep.subr.mxu0 0.0
        %1104 = vmatpush1.msra.mxu0 %v990
        %1105 = vmatprep.subr.mxu0 0.0
        %1106 = vmatpush1.msra.mxu0 %v989
        %1107 = vmatprep.subr.mxu0 0.0
        %1108 = vmatpush1.msra.mxu0 %v988
        %1109 = vmatprep.subr.mxu0 0.0
        %1110 = vmatpush1.msra.mxu0 %v987
        %1111 = vmatprep.subr.mxu0 0.0
        %1112 = vmatpush1.msra.mxu0 %v986
        %1113 = vmatprep.subr.mxu0 0.0
        %1114 = vmatpush1.msra.mxu0 %v985
        %1115 = vmatprep.subr.mxu0 0.0
        %1116 = vmatpush1.msra.mxu0 %v984
        %1117 = vmatprep.subr.mxu0 0.0
        %1118 = vmatpush1.msra.mxu0 %v983
        %1119 = vmatprep.subr.mxu0 0.0
        %1120 = vmatpush2.msra.mxu0 0.0
        %1121 = vmatprep.subr.mxu0 0.0
        %1122 = vmatpush2.msra.mxu0 0.0
        %1123 = vmatprep.subr.mxu0 0.0
        %1124 = vmatpush2.msra.mxu0 0.0
        %1125 = vmatprep.subr.mxu0 0.0
        %1126 = vmatpush2.msra.mxu0 0.0
        %1127 = vmatprep.subr.mxu0 0.0
        %1128 = vmatpush2.msra.mxu0 0.0
        %1129 = vmatprep.subr.mxu0 0.0
        %1130 = vmatpush2.msra.mxu0 0.0
        %1131 = vmatprep.subr.mxu0 0.0
        %1132 = vmatpush2.msra.mxu0 0.0
        %1133 = vmatprep.subr.mxu0 0.0
        %1134 = vmatpush2.msra.mxu0 0.0
        %1135 = vmatprep.subr.mxu0 0.0
        %1136 = vmatpush2.msra.mxu0 0.0
        %1137 = vmatprep.subr.mxu0 0.0
        %1138 = vmatpush2.msra.mxu0 0.0
        %1139 = vmatprep.subr.mxu0 0.0
        %1140 = vmatpush2.msra.mxu0 0.0
        %1141 = vmatprep.subr.mxu0 0.0
        %1142 = vmatpush2.msra.mxu0 0.0
        %1143 = vmatprep.subr.mxu0 0.0
        %1144 = vmatpush2.msra.mxu0 0.0
        %1145 = vmatprep.subr.mxu0 0.0
        %1146 = vmatpush2.msra.mxu0 0.0
        %1147 = vmatprep.subr.mxu0 0.0
        %1148 = vmatpush2.msra.mxu0 0.0
        %1149 = vmatprep.subr.mxu0 0.0
        %1150 = vmatpush2.msra.mxu0 0.0
        %1151 = vmatprep.mubr.f32.mxu0 0.0
        %1152 = vmatmul.mubr.f32.gmra.mxu0 %v982
        %v1153 = vpop.f32.mrf.mxu0
        %v1154 = vadd.f32 %v1084, %v1153
        %v1155 = vpop.f32.mrf.mxu0
        %1156 = vdwg.mxu0
        %v1157 = vld [vmem:[#allocation4 + $0x2] sm:$0xff]
        %s1158 = scalar_lea.vmem [#allocation7], 256
        %v1159 = vld [vmem:[%s1158] sm:$0xff]
        %v1160 = vld [vmem:[%s1158 + $0x8] sm:$0xff]
        %v1161 = vld [vmem:[%s1158 + $0x10] sm:$0xff]
        %v1162 = vld [vmem:[%s1158 + $0x18] sm:$0xff]
        %v1163 = vld [vmem:[%s1158 + $0x20] sm:$0xff]
        %v1164 = vld [vmem:[%s1158 + $0x28] sm:$0xff]
        %v1165 = vld [vmem:[%s1158 + $0x30] sm:$0xff]
        %v1166 = vld [vmem:[%s1158 + $0x38] sm:$0xff]
        %v1167 = vld [vmem:[%s1158 + $0x40] sm:$0xff]
        %v1168 = vld [vmem:[%s1158 + $0x48] sm:$0xff]
        %v1169 = vld [vmem:[%s1158 + $0x50] sm:$0xff]
        %v1170 = vld [vmem:[%s1158 + $0x58] sm:$0xff]
        %v1171 = vld [vmem:[%s1158 + $0x60] sm:$0xff]
        %v1172 = vld [vmem:[%s1158 + $0x68] sm:$0xff]
        %v1173 = vld [vmem:[%s1158 + $0x70] sm:$0xff]
        %v1174 = vld [vmem:[%s1158 + $0x78] sm:$0xff]
        %1175 = vmatprep.subr.mxu0 0.0
        %1176 = vmatpush1.msra.mxu0 %v1174
        %1177 = vmatprep.subr.mxu0 0.0
        %1178 = vmatpush1.msra.mxu0 %v1173
        %1179 = vmatprep.subr.mxu0 0.0
        %1180 = vmatpush1.msra.mxu0 %v1172
        %1181 = vmatprep.subr.mxu0 0.0
        %1182 = vmatpush1.msra.mxu0 %v1171
        %1183 = vmatprep.subr.mxu0 0.0
        %1184 = vmatpush1.msra.mxu0 %v1170
        %1185 = vmatprep.subr.mxu0 0.0
        %1186 = vmatpush1.msra.mxu0 %v1169
        %1187 = vmatprep.subr.mxu0 0.0
        %1188 = vmatpush1.msra.mxu0 %v1168
        %1189 = vmatprep.subr.mxu0 0.0
        %1190 = vmatpush1.msra.mxu0 %v1167
        %1191 = vmatprep.subr.mxu0 0.0
        %1192 = vmatpush1.msra.mxu0 %v1166
        %1193 = vmatprep.subr.mxu0 0.0
        %1194 = vmatpush1.msra.mxu0 %v1165
        %1195 = vmatprep.subr.mxu0 0.0
        %1196 = vmatpush1.msra.mxu0 %v1164
        %1197 = vmatprep.subr.mxu0 0.0
        %1198 = vmatpush1.msra.mxu0 %v1163
        %1199 = vmatprep.subr.mxu0 0.0
        %1200 = vmatpush1.msra.mxu0 %v1162
        %1201 = vmatprep.subr.mxu0 0.0
        %1202 = vmatpush1.msra.mxu0 %v1161
        %1203 = vmatprep.subr.mxu0 0.0
        %1204 = vmatpush1.msra.mxu0 %v1160
        %1205 = vmatprep.subr.mxu0 0.0
        %1206 = vmatpush1.msra.mxu0 %v1159
        %1207 = vmatprep.subr.mxu0 0.0
        %1208 = vmatpush2.msra.mxu0 0.0
        %1209 = vmatprep.subr.mxu0 0.0
        %1210 = vmatpush2.msra.mxu0 0.0
        %1211 = vmatprep.subr.mxu0 0.0
        %1212 = vmatpush2.msra.mxu0 0.0
        %1213 = vmatprep.subr.mxu0 0.0
        %1214 = vmatpush2.msra.mxu0 0.0
        %1215 = vmatprep.subr.mxu0 0.0
        %1216 = vmatpush2.msra.mxu0 0.0
        %1217 = vmatprep.subr.mxu0 0.0
        %1218 = vmatpush2.msra.mxu0 0.0
        %1219 = vmatprep.subr.mxu0 0.0
        %1220 = vmatpush2.msra.mxu0 0.0
        %1221 = vmatprep.subr.mxu0 0.0
        %1222 = vmatpush2.msra.mxu0 0.0
        %1223 = vmatprep.subr.mxu0 0.0
        %1224 = vmatpush2.msra.mxu0 0.0
        %1225 = vmatprep.subr.mxu0 0.0
        %1226 = vmatpush2.msra.mxu0 0.0
        %1227 = vmatprep.subr.mxu0 0.0
        %1228 = vmatpush2.msra.mxu0 0.0
        %1229 = vmatprep.subr.mxu0 0.0
        %1230 = vmatpush2.msra.mxu0 0.0
        %1231 = vmatprep.subr.mxu0 0.0
        %1232 = vmatpush2.msra.mxu0 0.0
        %1233 = vmatprep.subr.mxu0 0.0
        %1234 = vmatpush2.msra.mxu0 0.0
        %1235 = vmatprep.subr.mxu0 0.0
        %1236 = vmatpush2.msra.mxu0 0.0
        %1237 = vmatprep.subr.mxu0 0.0
        %1238 = vmatpush2.msra.mxu0 0.0
        %1239 = vmatprep.mubr.f32.mxu0 0.0
        %1240 = vmatmul.mubr.f32.gmra.mxu0 %v1157
        %v1241 = vpop.f32.mrf.mxu0
        %v1242 = vadd.f32 0.0, %v1241
        %v1243 = vpop.f32.mrf.mxu0
        %1244 = vdwg.mxu0
        %v1245 = vadd.f32 %v1154, %v1242
        %v1246 = vld [vmem:[%s7] sm:$0x1]
        %v1248 = vlaneseq
        %v1249 = vshrl.u32 %v1248, 7
        %v1250 = vsub.s32 0, %v1249
        %v1251 = vrot.slane %v1246, %v1250
        %v1253 = vadd.f32 %v1245, %v1251
        %v1254 = vtanh.pop %v1253
        %1255 = vst.msk [vmem:[%s389] sm:$0xff] %vm394, %v1254
        %p1256 = scmp.lt.s32.totalorder %s25, 1
        %s1257 = scalar_select %p1256, %s25, 1
        %p1258 = scmp.lt.s32.totalorder %s26, 0
        %s1259 = scalar_select %p1258, %s26, 0
        %s1260 = sadd.s32 %s1259, %s1257
        %s1261 = smul.addr %s1260, 8
        %s1262 = scalar_lea.vmem %s8, %s1261
        // Predicated region
        $region69: #{_lambda_.1} parent=51 // pred_check
          %p1263 = pneg %p235
        $region70: #{_lambda_.1} parent=51 // pred_check_branch
          %1265 = sbr.rel (%p1263) target = $region72
        $region71: #{_lambda_.1} parent=51 // pred_region
          _
        $region72: #{_lambda_.1} parent=51 // pred_fallthru
          _
      $region52: #{_lambda_.1} parent=5 // pred_fallthru
        _
      %p1266 = scmp.le.s32.totalorder 2, %s16
      // Predicated region
      $region73: #{_lambda_.1} parent=5 // pred_check
        %p1267 = pneg %p1266
      $region74: #{_lambda_.1} parent=5 // pred_check_branch
        %1269 = sbr.rel (%p1267) target = $region76
      $region75: #{_lambda_.1} parent=5 // pred_region
        %s1270 = ssub.s32 %s16, 2
        // Predicated region
        $region77: #{_lambda_.1} parent=75 // pred_check
          %p1271 = pneg %p241
        $region78: #{_lambda_.1} parent=75 // pred_check_branch
          %1273 = sbr.rel (%p1271) target = $region80
        $region79: #{_lambda_.1} parent=75 // pred_region
          %p1274 = scmp.lt.s32.totalorder %s27, 1
          %s1275 = scalar_select %p1274, %s27, 1
          %p1276 = scmp.lt.s32.totalorder %s28, 0
          %s1277 = scalar_select %p1276, %s28, 0
          %s1278 = sadd.s32 %s1277, %s1275
          %s1279 = smul.addr %s1278, 8
          %s1280 = scalar_lea.vmem %s8, %s1279
        $region80: #{_lambda_.1} parent=75 // pred_fallthru
          _
      $region76: #{_lambda_.1} parent=5 // pred_fallthru
        _
    $region6: #{_lambda_.1} parent=1 // loop_footer
      %s20 = sadd.s32 1, %s16
    $region7: #{_lambda_.1} parent=1 // loop_footer_branch
      %15 = sbr.rel target = $region3
    $region8: #{_lambda_.1} parent=1 // loop_exit
      _
    %1281 = vsyncpa [#allocation6], 1
    %s1282 = scalar_lea.sflag [#allocation6], 1
    %1283 = vsyncpa %s1282, 1
    %1284 = vsyncpa [#allocation8], 1

</llo_original>
